<compile_context>
chip_gen: v7x
topology: tpu7x:2x2x1
jax: 0.10.0
libtpu: 0.0.40
codegen_flags: <defaults>
</compile_context>

<pallas_src>
import functools

import jax
import jax.numpy as jnp
from jax import lax
from jax.experimental import pallas as pl
from jax.experimental.pallas import tpu as pltpu

OUT_LANES = 128  # packed output width: one full f32 vreg row -> unmasked store


# ----------------------------- Pallas kernel -------------------------------
def rnn_attention_kernel(x_ref, wg_ref, wh_ref, b_ref, out_ref, *, H, D1, L):
    """x_ref:(S,B,E)  wg_ref:(E+H,3H)  wh_ref:(3H+D1,H)  b_ref:(5,128)
    out_ref:(B,128) = [logits(L) | attn_hidden(H) | attn_weights(S) | 0-pad]."""
    S, B, E = x_ref.shape
    f32 = jnp.float32

    # ---- unpack weight / bias slabs (static slices, one-time cost) ----
    wih = wg_ref[0:E, :]                        # (E, 3H)
    whh = wg_ref[E:E + H, :]                    # (H, 3H)
    w_ctx = wh_ref[0:H, :]                      # (H, H)  concat_linear, context half
    w_fh = wh_ref[H:2 * H, :]                   # (H, H)  concat_linear, final-h half
    wl1 = wh_ref[2 * H:3 * H, 0:D1]             # (H, D1)
    wl2 = wh_ref[3 * H:3 * H + D1, 0:L]         # (D1, L)
    gi_bias = b_ref[0:1, 0:3 * H]               # (1,3H) = [bih_rz+bhh_rz | bih_n]
    bhh_n = b_ref[1:2, 0:H]                     # (1,H)
    bcat = b_ref[2:3, 0:H]                      # (1,H)
    bl1 = b_ref[3:4, 0:D1]                      # (1,D1)
    bl2 = b_ref[4:5, 0:L]                       # (1,L)

    # ---- hoisted input projection: ONE (S*B,E)@(E,3H) MXU pass ----
    x_flat = x_ref[...].reshape(S * B, E)
    gi = (jnp.dot(x_flat, wih, preferred_element_type=f32) + gi_bias
          ).reshape(S, B, 3 * H)

    # ---- GRU recurrence: h in vregs, fully unrolled, ONE fused dot per step ----
    h = jnp.zeros((B, H), f32)
    hs = []
    for t in range(S):
        gh = jnp.dot(h, whh, preferred_element_type=f32)        # (B, 3H)
        gi_t = gi[t]                                            # (B, 3H)
        rz = jax.nn.sigmoid(gi_t[:, :2 * H] + gh[:, :2 * H])    # fused r,z
        r = rz[:, :H]
        z = rz[:, H:]
        n = jnp.tanh(gi_t[:, 2 * H:] + r * (gh[:, 2 * H:] + bhh_n))
        h = n + z * (h - n)                                     # == (1-z)*n + z*h
        hs.append(h)
    final_h = h                                                 # (B, H)

    # ---- Attention.forward, method == DOT (lane-dense formulation) ----
    stacked = jnp.stack(hs, axis=1)                             # (B, S, H)
    scores = jnp.sum(stacked * final_h[:, None, :], axis=-1)    # (B, S)
    m = jnp.max(scores, axis=1, keepdims=True)
    e = jnp.exp(scores - m)
    attn = e / jnp.sum(e, axis=1, keepdims=True)                # exact softmax
    context = jnp.sum(attn[:, :, None] * stacked, axis=1)       # (B, H)

    # concat_linear(cat(context, final_h)) == context@W[:H] + final_h@W[H:]
    attn_hidden = jnp.tanh(
        jnp.dot(context, w_ctx, preferred_element_type=f32)
        + jnp.dot(final_h, w_fh, preferred_element_type=f32)
        + bcat)                                                 # (B, H)

    # ---- MLP head (ReLU after every linear, incl. last -- see header) ----
    h1 = jnp.maximum(
        jnp.dot(attn_hidden, wl1, preferred_element_type=f32) + bl1, 0.0)
    logits = jnp.maximum(
        jnp.dot(h1, wl2, preferred_element_type=f32) + bl2, 0.0)

    # ---- single lane-dense packed output (one unmasked store, one DMA) ----
    pad = jnp.zeros((B, OUT_LANES - (L + H + S)), f32)
    out_ref[...] = jnp.concatenate([logits, attn_hidden, attn, pad], axis=1)


# ------------------------------ wrapper -------------------------------------
def rnn_classifier_forward(token_ids, p):
    """token_ids: (B, S, 1) int32. Returns (logits, attn_hidden, attn_weights)."""
    B, S, _ = token_ids.shape
    E = p["embedding"].shape[1]
    H = p["whh"].shape[0]
    D1 = p["wl1"].shape[1]
    L = p["wl2"].shape[1]

    # Embedding gather + time-major layout: tiny XLA glue, fused under jit.
    ids = jnp.squeeze(token_ids, axis=-1)                    # (B, S)
    x = jnp.take(p["embedding"], ids, axis=0)                # (B, S, E)
    x = jnp.transpose(x, (1, 0, 2)).astype(jnp.float32)      # (S, B, E)

    # --- pack parameters into 3 slabs (constants; XLA folds/fuses this) ---
    w_gru = jnp.concatenate([p["wih"], p["whh"]], axis=0)    # (E+H, 3H)
    wl1_p = jnp.pad(p["wl1"], ((0, 0), (0, H - D1)))
    wl2_p = jnp.pad(p["wl2"], ((0, 0), (0, H - L)))
    w_head = jnp.concatenate([p["wcat"], wl1_p, wl2_p], axis=0)   # (3H+D1, H)

    def _row(v):                                             # pad a bias row to 128 lanes
        return jnp.pad(v, ((0, 0), (0, 128 - v.shape[1])))

    gi_bias = jnp.concatenate(                               # bih_rz+bhh_rz folded; bih_n
        [p["bih"][:, :2 * H] + p["bhh"][:, :2 * H], p["bih"][:, 2 * H:]], axis=1)
    bias = jnp.concatenate(
        [_row(gi_bias), _row(p["bhh"][:, 2 * H:]), _row(p["bcat"]),
         _row(p["bl1"]), _row(p["bl2"])], axis=0)            # (5, 128)

    vmem = pl.BlockSpec(memory_space=pltpu.MemorySpace.VMEM)
    slab = pl.pallas_call(
        functools.partial(rnn_attention_kernel, H=H, D1=D1, L=L),
        out_shape=jax.ShapeDtypeStruct((B, OUT_LANES), jnp.float32),
        in_specs=[vmem] * 4,
        out_specs=vmem,
    )(x, w_gru, w_head, bias)

    # WARNING: logits are clamped at 0 by the trailing ReLU (spec bug, kept).
    logits = slab[:, :L]
    attn_hidden = slab[:, L:L + H]
    attn_weights = slab[:, L + H:L + H + S]
    return logits, attn_hidden, attn_weights


# --------------------------- pure-JAX reference ------------------------------
def rnn_classifier_ref(token_ids, p):
    ids = jnp.squeeze(token_ids, axis=-1)
    x = jnp.take(p["embedding"], ids, axis=0)                # (B, S, E)
    x = jnp.transpose(x, (1, 0, 2)).astype(jnp.float32)      # (S, B, E)
    B = x.shape[1]
    H = p["whh"].shape[0]
    h0 = jnp.zeros((B, H), jnp.float32)

    def step(h, x_t):
        gi = x_t @ p["wih"] + p["bih"]
        gh = h @ p["whh"] + p["bhh"]
        r = jax.nn.sigmoid(gi[:, :H] + gh[:, :H])
        z = jax.nn.sigmoid(gi[:, H:2 * H] + gh[:, H:2 * H])
        n = jnp.tanh(gi[:, 2 * H:] + r * gh[:, 2 * H:])
        h_new = (1.0 - z) * n + z * h
        return h_new, h_new

    final_h, outs = lax.scan(step, h0, x)                    # outs: (S, B, H)
    rnn_outputs = jnp.transpose(outs, (1, 0, 2))             # (B, S, H)
    # Attention.forward (DOT)
    scores = jnp.einsum("bsh,bh->bs", rnn_outputs, final_h)
    attn_weights = jax.nn.softmax(scores, axis=1)
    context = jnp.einsum("bsh,bs->bh", rnn_outputs, attn_weights)
    cat = jnp.concatenate([context, final_h], axis=1)
    attn_hidden = jnp.tanh(cat @ p["wcat"] + p["bcat"])
    h1 = jnp.maximum(attn_hidden @ p["wl1"] + p["bl1"], 0.0)
    logits = jnp.maximum(h1 @ p["wl2"] + p["bl2"], 0.0)
    return logits, attn_hidden, attn_weights


# --------------------------------- main --------------------------------------
if __name__ == "__main__":
    VOCAB, E, H, D1, L = 50, 16, 32, 16, 3
    B, S = 8, 8          # B=8 fills the f32 sublane dimension

    key = jax.random.PRNGKey(0)
    ks = jax.random.split(key, 10)

    def init(k, shape, scale=0.1):
        return (scale * jax.random.normal(k, shape)).astype(jnp.float32)

    params = {
        "embedding": init(ks[0], (VOCAB, E), 1.0),
        # GRU weights (pre-transposed to x @ W form), gate order [r, z, n]
        "wih": init(ks[1], (E, 3 * H)),
        "whh": init(ks[2], (H, 3 * H)),
        "bih": init(ks[3], (1, 3 * H)),
        "bhh": init(ks[4], (1, 3 * H)),
        # attention concat_linear: Linear(2H -> H)
        "wcat": init(ks[5], (2 * H, H)),
        "bcat": jnp.full((1, H), 0.01, jnp.float32),
        # MLP head: Linear(H -> D1), Linear(D1 -> L)
        "wl1": init(ks[6], (H, D1)),
        "bl1": jnp.full((1, D1), 0.01, jnp.float32),
        "wl2": init(ks[7], (D1, L)),
        "bl2": jnp.full((1, L), 0.01, jnp.float32),
    }

    token_ids = jax.random.randint(ks[8], (B, S, 1), 0, VOCAB, dtype=jnp.int32)

    fwd = jax.jit(rnn_classifier_forward)
    out, attn_hidden, attn_w = jax.block_until_ready(fwd(token_ids, params))

    ref_out, ref_ah, ref_aw = jax.block_until_ready(
        rnn_classifier_ref(token_ids, params))

    assert out.shape == (B, L), out.shape
    assert attn_hidden.shape == (B, H), attn_hidden.shape
    assert attn_w.shape == (B, S), attn_w.shape
    # Tolerance covers MXU default-precision accumulation differences.
    assert jnp.allclose(out, ref_out, atol=1e-3, rtol=1e-3), (out, ref_out)
    assert jnp.allclose(attn_hidden, ref_ah, atol=1e-3, rtol=1e-3), (attn_hidden, ref_ah)
    assert jnp.allclose(attn_w, ref_aw, atol=1e-3, rtol=1e-3), (attn_w, ref_aw)

    print("KERNEL_OK")
</pallas_src>

<mosaic_0001>
module attributes {stable_mosaic.version = 11 : i64} {
  func.func @rnn_attention_kernel(%arg0: memref<8x8x16xf32, #tpu.memory_space<vmem>>, %arg1: memref<48x96xf32, #tpu.memory_space<vmem>>, %arg2: memref<112x32xf32, #tpu.memory_space<vmem>>, %arg3: memref<5x128xf32, #tpu.memory_space<vmem>>, %arg4: memref<8x128xf32, #tpu.memory_space<vmem>>) attributes {dimension_semantics = [], scalar_prefetch = 0 : i64, scratch_operands = 0 : i64, tpu.core_type = #tpu.core_type<tc>} {
    %c0 = arith.constant 0 : index
    %c0_0 = arith.constant 0 : index
    %0 = vector.load %arg1[%c0, %c0_0] : memref<48x96xf32, #tpu.memory_space<vmem>>, vector<16x96xf32>
    %c16 = arith.constant 16 : index
    %c0_1 = arith.constant 0 : index
    %1 = vector.load %arg1[%c16, %c0_1] : memref<48x96xf32, #tpu.memory_space<vmem>>, vector<32x96xf32>
    %c0_2 = arith.constant 0 : index
    %c0_3 = arith.constant 0 : index
    %2 = vector.load %arg2[%c0_2, %c0_3] : memref<112x32xf32, #tpu.memory_space<vmem>>, vector<32x32xf32>
    %c32 = arith.constant 32 : index
    %c0_4 = arith.constant 0 : index
    %3 = vector.load %arg2[%c32, %c0_4] : memref<112x32xf32, #tpu.memory_space<vmem>>, vector<32x32xf32>
    %c64 = arith.constant 64 : index
    %c0_5 = arith.constant 0 : index
    %4 = vector.load %arg2[%c64, %c0_5] : memref<112x32xf32, #tpu.memory_space<vmem>>, vector<32x16xf32>
    %c96 = arith.constant 96 : index
    %c0_6 = arith.constant 0 : index
    %5 = vector.load %arg2[%c96, %c0_6] : memref<112x32xf32, #tpu.memory_space<vmem>>, vector<16x3xf32>
    %c0_7 = arith.constant 0 : index
    %c0_8 = arith.constant 0 : index
    %6 = vector.load %arg3[%c0_7, %c0_8] : memref<5x128xf32, #tpu.memory_space<vmem>>, vector<1x96xf32>
    %c1 = arith.constant 1 : index
    %c0_9 = arith.constant 0 : index
    %7 = vector.load %arg3[%c1, %c0_9] : memref<5x128xf32, #tpu.memory_space<vmem>>, vector<1x32xf32>
    %c2 = arith.constant 2 : index
    %c0_10 = arith.constant 0 : index
    %8 = vector.load %arg3[%c2, %c0_10] : memref<5x128xf32, #tpu.memory_space<vmem>>, vector<1x32xf32>
    %c3 = arith.constant 3 : index
    %c0_11 = arith.constant 0 : index
    %9 = vector.load %arg3[%c3, %c0_11] : memref<5x128xf32, #tpu.memory_space<vmem>>, vector<1x16xf32>
    %c4 = arith.constant 4 : index
    %c0_12 = arith.constant 0 : index
    %10 = vector.load %arg3[%c4, %c0_12] : memref<5x128xf32, #tpu.memory_space<vmem>>, vector<1x3xf32>
    %c0_13 = arith.constant 0 : index
    %c0_14 = arith.constant 0 : index
    %c0_15 = arith.constant 0 : index
    %11 = vector.load %arg0[%c0_13, %c0_14, %c0_15] : memref<8x8x16xf32, #tpu.memory_space<vmem>>, vector<8x8x16xf32>
    %12 = vector.shape_cast %11 : vector<8x8x16xf32> to vector<64x16xf32>
    %cst = arith.constant dense<0.000000e+00> : vector<64x96xf32>
    %13 = tpu.matmul %12, %0, %cst {dimension_numbers = #tpu.dot_dimension_numbers<[1], [0], [0], [1], [0, 0, 1, 1], [], []>} : vector<64x16xf32>, vector<16x96xf32>, vector<64x96xf32> -> vector<64x96xf32>
    %14 = vector.broadcast %6 : vector<1x96xf32> to vector<64x96xf32>
    %15 = arith.addf %13, %14 : vector<64x96xf32>
    %16 = vector.shape_cast %15 : vector<64x96xf32> to vector<8x8x96xf32>
    %cst_16 = arith.constant 0.000000e+00 : f32
    %17 = vector.broadcast %cst_16 : f32 to vector<8x32xf32>
    %cst_17 = arith.constant dense<0.000000e+00> : vector<8x96xf32>
    %18 = tpu.matmul %17, %1, %cst_17 {dimension_numbers = #tpu.dot_dimension_numbers<[1], [0], [0], [1], [0, 0, 1, 1], [], []>} : vector<8x32xf32>, vector<32x96xf32>, vector<8x96xf32> -> vector<8x96xf32>
    %19 = vector.extract_strided_slice %16 {offsets = [0, 0, 0], sizes = [1, 8, 96], strides = [1, 1, 1]} : vector<8x8x96xf32> to vector<1x8x96xf32>
    %20 = vector.shape_cast %19 : vector<1x8x96xf32> to vector<8x96xf32>
    %21 = vector.extract_strided_slice %20 {offsets = [0, 0], sizes = [8, 64], strides = [1, 1]} : vector<8x96xf32> to vector<8x64xf32>
    %22 = vector.extract_strided_slice %18 {offsets = [0, 0], sizes = [8, 64], strides = [1, 1]} : vector<8x96xf32> to vector<8x64xf32>
    %23 = arith.addf %21, %22 : vector<8x64xf32>
    %24 = arith.negf %23 : vector<8x64xf32>
    %25 = math.exp %24 : vector<8x64xf32>
    %cst_18 = arith.constant 1.000000e+00 : f32
    %26 = vector.broadcast %cst_18 : f32 to vector<8x64xf32>
    %27 = arith.addf %26, %25 : vector<8x64xf32>
    %28 = arith.divf %26, %27 : vector<8x64xf32>
    %29 = vector.extract_strided_slice %28 {offsets = [0, 0], sizes = [8, 32], strides = [1, 1]} : vector<8x64xf32> to vector<8x32xf32>
    %30 = vector.extract_strided_slice %28 {offsets = [0, 32], sizes = [8, 32], strides = [1, 1]} : vector<8x64xf32> to vector<8x32xf32>
    %31 = vector.extract_strided_slice %20 {offsets = [0, 64], sizes = [8, 32], strides = [1, 1]} : vector<8x96xf32> to vector<8x32xf32>
    %32 = vector.extract_strided_slice %18 {offsets = [0, 64], sizes = [8, 32], strides = [1, 1]} : vector<8x96xf32> to vector<8x32xf32>
    %33 = vector.broadcast %7 : vector<1x32xf32> to vector<8x32xf32>
    %34 = arith.addf %32, %33 : vector<8x32xf32>
    %35 = arith.mulf %29, %34 : vector<8x32xf32>
    %36 = arith.addf %31, %35 : vector<8x32xf32>
    %37 = math.tanh %36 : vector<8x32xf32>
    %38 = arith.subf %17, %37 : vector<8x32xf32>
    %39 = arith.mulf %30, %38 : vector<8x32xf32>
    %40 = arith.addf %37, %39 : vector<8x32xf32>
    %cst_19 = arith.constant dense<0.000000e+00> : vector<8x96xf32>
    %41 = tpu.matmul %40, %1, %cst_19 {dimension_numbers = #tpu.dot_dimension_numbers<[1], [0], [0], [1], [0, 0, 1, 1], [], []>} : vector<8x32xf32>, vector<32x96xf32>, vector<8x96xf32> -> vector<8x96xf32>
    %42 = vector.extract_strided_slice %16 {offsets = [1, 0, 0], sizes = [1, 8, 96], strides = [1, 1, 1]} : vector<8x8x96xf32> to vector<1x8x96xf32>
    %43 = vector.shape_cast %42 : vector<1x8x96xf32> to vector<8x96xf32>
    %44 = vector.extract_strided_slice %43 {offsets = [0, 0], sizes = [8, 64], strides = [1, 1]} : vector<8x96xf32> to vector<8x64xf32>
    %45 = vector.extract_strided_slice %41 {offsets = [0, 0], sizes = [8, 64], strides = [1, 1]} : vector<8x96xf32> to vector<8x64xf32>
    %46 = arith.addf %44, %45 : vector<8x64xf32>
    %47 = arith.negf %46 : vector<8x64xf32>
    %48 = math.exp %47 : vector<8x64xf32>
    %cst_20 = arith.constant 1.000000e+00 : f32
    %49 = vector.broadcast %cst_20 : f32 to vector<8x64xf32>
    %50 = arith.addf %49, %48 : vector<8x64xf32>
    %51 = arith.divf %49, %50 : vector<8x64xf32>
    %52 = vector.extract_strided_slice %51 {offsets = [0, 0], sizes = [8, 32], strides = [1, 1]} : vector<8x64xf32> to vector<8x32xf32>
    %53 = vector.extract_strided_slice %51 {offsets = [0, 32], sizes = [8, 32], strides = [1, 1]} : vector<8x64xf32> to vector<8x32xf32>
    %54 = vector.extract_strided_slice %43 {offsets = [0, 64], sizes = [8, 32], strides = [1, 1]} : vector<8x96xf32> to vector<8x32xf32>
    %55 = vector.extract_strided_slice %41 {offsets = [0, 64], sizes = [8, 32], strides = [1, 1]} : vector<8x96xf32> to vector<8x32xf32>
    %56 = vector.broadcast %7 : vector<1x32xf32> to vector<8x32xf32>
    %57 = arith.addf %55, %56 : vector<8x32xf32>
    %58 = arith.mulf %52, %57 : vector<8x32xf32>
    %59 = arith.addf %54, %58 : vector<8x32xf32>
    %60 = math.tanh %59 : vector<8x32xf32>
    %61 = arith.subf %40, %60 : vector<8x32xf32>
    %62 = arith.mulf %53, %61 : vector<8x32xf32>
    %63 = arith.addf %60, %62 : vector<8x32xf32>
    %cst_21 = arith.constant dense<0.000000e+00> : vector<8x96xf32>
    %64 = tpu.matmul %63, %1, %cst_21 {dimension_numbers = #tpu.dot_dimension_numbers<[1], [0], [0], [1], [0, 0, 1, 1], [], []>} : vector<8x32xf32>, vector<32x96xf32>, vector<8x96xf32> -> vector<8x96xf32>
    %65 = vector.extract_strided_slice %16 {offsets = [2, 0, 0], sizes = [1, 8, 96], strides = [1, 1, 1]} : vector<8x8x96xf32> to vector<1x8x96xf32>
    %66 = vector.shape_cast %65 : vector<1x8x96xf32> to vector<8x96xf32>
    %67 = vector.extract_strided_slice %66 {offsets = [0, 0], sizes = [8, 64], strides = [1, 1]} : vector<8x96xf32> to vector<8x64xf32>
    %68 = vector.extract_strided_slice %64 {offsets = [0, 0], sizes = [8, 64], strides = [1, 1]} : vector<8x96xf32> to vector<8x64xf32>
    %69 = arith.addf %67, %68 : vector<8x64xf32>
    %70 = arith.negf %69 : vector<8x64xf32>
    %71 = math.exp %70 : vector<8x64xf32>
    %cst_22 = arith.constant 1.000000e+00 : f32
    %72 = vector.broadcast %cst_22 : f32 to vector<8x64xf32>
    %73 = arith.addf %72, %71 : vector<8x64xf32>
    %74 = arith.divf %72, %73 : vector<8x64xf32>
    %75 = vector.extract_strided_slice %74 {offsets = [0, 0], sizes = [8, 32], strides = [1, 1]} : vector<8x64xf32> to vector<8x32xf32>
    %76 = vector.extract_strided_slice %74 {offsets = [0, 32], sizes = [8, 32], strides = [1, 1]} : vector<8x64xf32> to vector<8x32xf32>
    %77 = vector.extract_strided_slice %66 {offsets = [0, 64], sizes = [8, 32], strides = [1, 1]} : vector<8x96xf32> to vector<8x32xf32>
    %78 = vector.extract_strided_slice %64 {offsets = [0, 64], sizes = [8, 32], strides = [1, 1]} : vector<8x96xf32> to vector<8x32xf32>
    %79 = vector.broadcast %7 : vector<1x32xf32> to vector<8x32xf32>
    %80 = arith.addf %78, %79 : vector<8x32xf32>
    %81 = arith.mulf %75, %80 : vector<8x32xf32>
    %82 = arith.addf %77, %81 : vector<8x32xf32>
    %83 = math.tanh %82 : vector<8x32xf32>
    %84 = arith.subf %63, %83 : vector<8x32xf32>
    %85 = arith.mulf %76, %84 : vector<8x32xf32>
    %86 = arith.addf %83, %85 : vector<8x32xf32>
    %cst_23 = arith.constant dense<0.000000e+00> : vector<8x96xf32>
    %87 = tpu.matmul %86, %1, %cst_23 {dimension_numbers = #tpu.dot_dimension_numbers<[1], [0], [0], [1], [0, 0, 1, 1], [], []>} : vector<8x32xf32>, vector<32x96xf32>, vector<8x96xf32> -> vector<8x96xf32>
    %88 = vector.extract_strided_slice %16 {offsets = [3, 0, 0], sizes = [1, 8, 96], strides = [1, 1, 1]} : vector<8x8x96xf32> to vector<1x8x96xf32>
    %89 = vector.shape_cast %88 : vector<1x8x96xf32> to vector<8x96xf32>
    %90 = vector.extract_strided_slice %89 {offsets = [0, 0], sizes = [8, 64], strides = [1, 1]} : vector<8x96xf32> to vector<8x64xf32>
    %91 = vector.extract_strided_slice %87 {offsets = [0, 0], sizes = [8, 64], strides = [1, 1]} : vector<8x96xf32> to vector<8x64xf32>
    %92 = arith.addf %90, %91 : vector<8x64xf32>
    %93 = arith.negf %92 : vector<8x64xf32>
    %94 = math.exp %93 : vector<8x64xf32>
    %cst_24 = arith.constant 1.000000e+00 : f32
    %95 = vector.broadcast %cst_24 : f32 to vector<8x64xf32>
    %96 = arith.addf %95, %94 : vector<8x64xf32>
    %97 = arith.divf %95, %96 : vector<8x64xf32>
    %98 = vector.extract_strided_slice %97 {offsets = [0, 0], sizes = [8, 32], strides = [1, 1]} : vector<8x64xf32> to vector<8x32xf32>
    %99 = vector.extract_strided_slice %97 {offsets = [0, 32], sizes = [8, 32], strides = [1, 1]} : vector<8x64xf32> to vector<8x32xf32>
    %100 = vector.extract_strided_slice %89 {offsets = [0, 64], sizes = [8, 32], strides = [1, 1]} : vector<8x96xf32> to vector<8x32xf32>
    %101 = vector.extract_strided_slice %87 {offsets = [0, 64], sizes = [8, 32], strides = [1, 1]} : vector<8x96xf32> to vector<8x32xf32>
    %102 = vector.broadcast %7 : vector<1x32xf32> to vector<8x32xf32>
    %103 = arith.addf %101, %102 : vector<8x32xf32>
    %104 = arith.mulf %98, %103 : vector<8x32xf32>
    %105 = arith.addf %100, %104 : vector<8x32xf32>
    %106 = math.tanh %105 : vector<8x32xf32>
    %107 = arith.subf %86, %106 : vector<8x32xf32>
    %108 = arith.mulf %99, %107 : vector<8x32xf32>
    %109 = arith.addf %106, %108 : vector<8x32xf32>
    %cst_25 = arith.constant dense<0.000000e+00> : vector<8x96xf32>
    %110 = tpu.matmul %109, %1, %cst_25 {dimension_numbers = #tpu.dot_dimension_numbers<[1], [0], [0], [1], [0, 0, 1, 1], [], []>} : vector<8x32xf32>, vector<32x96xf32>, vector<8x96xf32> -> vector<8x96xf32>
    %111 = vector.extract_strided_slice %16 {offsets = [4, 0, 0], sizes = [1, 8, 96], strides = [1, 1, 1]} : vector<8x8x96xf32> to vector<1x8x96xf32>
    %112 = vector.shape_cast %111 : vector<1x8x96xf32> to vector<8x96xf32>
    %113 = vector.extract_strided_slice %112 {offsets = [0, 0], sizes = [8, 64], strides = [1, 1]} : vector<8x96xf32> to vector<8x64xf32>
    %114 = vector.extract_strided_slice %110 {offsets = [0, 0], sizes = [8, 64], strides = [1, 1]} : vector<8x96xf32> to vector<8x64xf32>
    %115 = arith.addf %113, %114 : vector<8x64xf32>
    %116 = arith.negf %115 : vector<8x64xf32>
    %117 = math.exp %116 : vector<8x64xf32>
    %cst_26 = arith.constant 1.000000e+00 : f32
    %118 = vector.broadcast %cst_26 : f32 to vector<8x64xf32>
    %119 = arith.addf %118, %117 : vector<8x64xf32>
    %120 = arith.divf %118, %119 : vector<8x64xf32>
    %121 = vector.extract_strided_slice %120 {offsets = [0, 0], sizes = [8, 32], strides = [1, 1]} : vector<8x64xf32> to vector<8x32xf32>
    %122 = vector.extract_strided_slice %120 {offsets = [0, 32], sizes = [8, 32], strides = [1, 1]} : vector<8x64xf32> to vector<8x32xf32>
    %123 = vector.extract_strided_slice %112 {offsets = [0, 64], sizes = [8, 32], strides = [1, 1]} : vector<8x96xf32> to vector<8x32xf32>
    %124 = vector.extract_strided_slice %110 {offsets = [0, 64], sizes = [8, 32], strides = [1, 1]} : vector<8x96xf32> to vector<8x32xf32>
    %125 = vector.broadcast %7 : vector<1x32xf32> to vector<8x32xf32>
    %126 = arith.addf %124, %125 : vector<8x32xf32>
    %127 = arith.mulf %121, %126 : vector<8x32xf32>
    %128 = arith.addf %123, %127 : vector<8x32xf32>
    %129 = math.tanh %128 : vector<8x32xf32>
    %130 = arith.subf %109, %129 : vector<8x32xf32>
    %131 = arith.mulf %122, %130 : vector<8x32xf32>
    %132 = arith.addf %129, %131 : vector<8x32xf32>
    %cst_27 = arith.constant dense<0.000000e+00> : vector<8x96xf32>
    %133 = tpu.matmul %132, %1, %cst_27 {dimension_numbers = #tpu.dot_dimension_numbers<[1], [0], [0], [1], [0, 0, 1, 1], [], []>} : vector<8x32xf32>, vector<32x96xf32>, vector<8x96xf32> -> vector<8x96xf32>
    %134 = vector.extract_strided_slice %16 {offsets = [5, 0, 0], sizes = [1, 8, 96], strides = [1, 1, 1]} : vector<8x8x96xf32> to vector<1x8x96xf32>
    %135 = vector.shape_cast %134 : vector<1x8x96xf32> to vector<8x96xf32>
    %136 = vector.extract_strided_slice %135 {offsets = [0, 0], sizes = [8, 64], strides = [1, 1]} : vector<8x96xf32> to vector<8x64xf32>
    %137 = vector.extract_strided_slice %133 {offsets = [0, 0], sizes = [8, 64], strides = [1, 1]} : vector<8x96xf32> to vector<8x64xf32>
    %138 = arith.addf %136, %137 : vector<8x64xf32>
    %139 = arith.negf %138 : vector<8x64xf32>
    %140 = math.exp %139 : vector<8x64xf32>
    %cst_28 = arith.constant 1.000000e+00 : f32
    %141 = vector.broadcast %cst_28 : f32 to vector<8x64xf32>
    %142 = arith.addf %141, %140 : vector<8x64xf32>
    %143 = arith.divf %141, %142 : vector<8x64xf32>
    %144 = vector.extract_strided_slice %143 {offsets = [0, 0], sizes = [8, 32], strides = [1, 1]} : vector<8x64xf32> to vector<8x32xf32>
    %145 = vector.extract_strided_slice %143 {offsets = [0, 32], sizes = [8, 32], strides = [1, 1]} : vector<8x64xf32> to vector<8x32xf32>
    %146 = vector.extract_strided_slice %135 {offsets = [0, 64], sizes = [8, 32], strides = [1, 1]} : vector<8x96xf32> to vector<8x32xf32>
    %147 = vector.extract_strided_slice %133 {offsets = [0, 64], sizes = [8, 32], strides = [1, 1]} : vector<8x96xf32> to vector<8x32xf32>
    %148 = vector.broadcast %7 : vector<1x32xf32> to vector<8x32xf32>
    %149 = arith.addf %147, %148 : vector<8x32xf32>
    %150 = arith.mulf %144, %149 : vector<8x32xf32>
    %151 = arith.addf %146, %150 : vector<8x32xf32>
    %152 = math.tanh %151 : vector<8x32xf32>
    %153 = arith.subf %132, %152 : vector<8x32xf32>
    %154 = arith.mulf %145, %153 : vector<8x32xf32>
    %155 = arith.addf %152, %154 : vector<8x32xf32>
    %cst_29 = arith.constant dense<0.000000e+00> : vector<8x96xf32>
    %156 = tpu.matmul %155, %1, %cst_29 {dimension_numbers = #tpu.dot_dimension_numbers<[1], [0], [0], [1], [0, 0, 1, 1], [], []>} : vector<8x32xf32>, vector<32x96xf32>, vector<8x96xf32> -> vector<8x96xf32>
    %157 = vector.extract_strided_slice %16 {offsets = [6, 0, 0], sizes = [1, 8, 96], strides = [1, 1, 1]} : vector<8x8x96xf32> to vector<1x8x96xf32>
    %158 = vector.shape_cast %157 : vector<1x8x96xf32> to vector<8x96xf32>
    %159 = vector.extract_strided_slice %158 {offsets = [0, 0], sizes = [8, 64], strides = [1, 1]} : vector<8x96xf32> to vector<8x64xf32>
    %160 = vector.extract_strided_slice %156 {offsets = [0, 0], sizes = [8, 64], strides = [1, 1]} : vector<8x96xf32> to vector<8x64xf32>
    %161 = arith.addf %159, %160 : vector<8x64xf32>
    %162 = arith.negf %161 : vector<8x64xf32>
    %163 = math.exp %162 : vector<8x64xf32>
    %cst_30 = arith.constant 1.000000e+00 : f32
    %164 = vector.broadcast %cst_30 : f32 to vector<8x64xf32>
    %165 = arith.addf %164, %163 : vector<8x64xf32>
    %166 = arith.divf %164, %165 : vector<8x64xf32>
    %167 = vector.extract_strided_slice %166 {offsets = [0, 0], sizes = [8, 32], strides = [1, 1]} : vector<8x64xf32> to vector<8x32xf32>
    %168 = vector.extract_strided_slice %166 {offsets = [0, 32], sizes = [8, 32], strides = [1, 1]} : vector<8x64xf32> to vector<8x32xf32>
    %169 = vector.extract_strided_slice %158 {offsets = [0, 64], sizes = [8, 32], strides = [1, 1]} : vector<8x96xf32> to vector<8x32xf32>
    %170 = vector.extract_strided_slice %156 {offsets = [0, 64], sizes = [8, 32], strides = [1, 1]} : vector<8x96xf32> to vector<8x32xf32>
    %171 = vector.broadcast %7 : vector<1x32xf32> to vector<8x32xf32>
    %172 = arith.addf %170, %171 : vector<8x32xf32>
    %173 = arith.mulf %167, %172 : vector<8x32xf32>
    %174 = arith.addf %169, %173 : vector<8x32xf32>
    %175 = math.tanh %174 : vector<8x32xf32>
    %176 = arith.subf %155, %175 : vector<8x32xf32>
    %177 = arith.mulf %168, %176 : vector<8x32xf32>
    %178 = arith.addf %175, %177 : vector<8x32xf32>
    %cst_31 = arith.constant dense<0.000000e+00> : vector<8x96xf32>
    %179 = tpu.matmul %178, %1, %cst_31 {dimension_numbers = #tpu.dot_dimension_numbers<[1], [0], [0], [1], [0, 0, 1, 1], [], []>} : vector<8x32xf32>, vector<32x96xf32>, vector<8x96xf32> -> vector<8x96xf32>
    %180 = vector.extract_strided_slice %16 {offsets = [7, 0, 0], sizes = [1, 8, 96], strides = [1, 1, 1]} : vector<8x8x96xf32> to vector<1x8x96xf32>
    %181 = vector.shape_cast %180 : vector<1x8x96xf32> to vector<8x96xf32>
    %182 = vector.extract_strided_slice %181 {offsets = [0, 0], sizes = [8, 64], strides = [1, 1]} : vector<8x96xf32> to vector<8x64xf32>
    %183 = vector.extract_strided_slice %179 {offsets = [0, 0], sizes = [8, 64], strides = [1, 1]} : vector<8x96xf32> to vector<8x64xf32>
    %184 = arith.addf %182, %183 : vector<8x64xf32>
    %185 = arith.negf %184 : vector<8x64xf32>
    %186 = math.exp %185 : vector<8x64xf32>
    %cst_32 = arith.constant 1.000000e+00 : f32
    %187 = vector.broadcast %cst_32 : f32 to vector<8x64xf32>
    %188 = arith.addf %187, %186 : vector<8x64xf32>
    %189 = arith.divf %187, %188 : vector<8x64xf32>
    %190 = vector.extract_strided_slice %189 {offsets = [0, 0], sizes = [8, 32], strides = [1, 1]} : vector<8x64xf32> to vector<8x32xf32>
    %191 = vector.extract_strided_slice %189 {offsets = [0, 32], sizes = [8, 32], strides = [1, 1]} : vector<8x64xf32> to vector<8x32xf32>
    %192 = vector.extract_strided_slice %181 {offsets = [0, 64], sizes = [8, 32], strides = [1, 1]} : vector<8x96xf32> to vector<8x32xf32>
    %193 = vector.extract_strided_slice %179 {offsets = [0, 64], sizes = [8, 32], strides = [1, 1]} : vector<8x96xf32> to vector<8x32xf32>
    %194 = vector.broadcast %7 : vector<1x32xf32> to vector<8x32xf32>
    %195 = arith.addf %193, %194 : vector<8x32xf32>
    %196 = arith.mulf %190, %195 : vector<8x32xf32>
    %197 = arith.addf %192, %196 : vector<8x32xf32>
    %198 = math.tanh %197 : vector<8x32xf32>
    %199 = arith.subf %178, %198 : vector<8x32xf32>
    %200 = arith.mulf %191, %199 : vector<8x32xf32>
    %201 = arith.addf %198, %200 : vector<8x32xf32>
    %202 = vector.shape_cast %40 : vector<8x32xf32> to vector<8x1x32xf32>
    %203 = vector.shape_cast %63 : vector<8x32xf32> to vector<8x1x32xf32>
    %204 = vector.shape_cast %86 : vector<8x32xf32> to vector<8x1x32xf32>
    %205 = vector.shape_cast %109 : vector<8x32xf32> to vector<8x1x32xf32>
    %206 = vector.shape_cast %132 : vector<8x32xf32> to vector<8x1x32xf32>
    %207 = vector.shape_cast %155 : vector<8x32xf32> to vector<8x1x32xf32>
    %208 = vector.shape_cast %178 : vector<8x32xf32> to vector<8x1x32xf32>
    %209 = vector.shape_cast %201 : vector<8x32xf32> to vector<8x1x32xf32>
    %210 = tpu.concatenate %202, %203, %204, %205, %206, %207, %208, %209 in 1 : vector<8x1x32xf32>, vector<8x1x32xf32>, vector<8x1x32xf32>, vector<8x1x32xf32>, vector<8x1x32xf32>, vector<8x1x32xf32>, vector<8x1x32xf32>, vector<8x1x32xf32> -> vector<8x8x32xf32>
    %211 = vector.shape_cast %201 : vector<8x32xf32> to vector<8x1x32xf32>
    %212 = vector.broadcast %211 : vector<8x1x32xf32> to vector<8x8x32xf32>
    %213 = arith.mulf %210, %212 : vector<8x8x32xf32>
    %cst_33 = arith.constant dense<0.000000e+00> : vector<8x8xf32>
    %214 = vector.multi_reduction <add>, %213, %cst_33 [2] : vector<8x8x32xf32> to vector<8x8xf32>
    %cst_34 = arith.constant dense<0xFF800000> : vector<8xf32>
    %215 = vector.multi_reduction <maximumf>, %214, %cst_34 [1] : vector<8x8xf32> to vector<8xf32>
    %216 = vector.shape_cast %215 : vector<8xf32> to vector<8x1xf32>
    %217 = vector.broadcast %216 : vector<8x1xf32> to vector<8x8xf32>
    %218 = arith.subf %214, %217 : vector<8x8xf32>
    %219 = math.exp %218 : vector<8x8xf32>
    %cst_35 = arith.constant dense<0.000000e+00> : vector<8xf32>
    %220 = vector.multi_reduction <add>, %219, %cst_35 [1] : vector<8x8xf32> to vector<8xf32>
    %221 = vector.shape_cast %220 : vector<8xf32> to vector<8x1xf32>
    %222 = vector.broadcast %221 : vector<8x1xf32> to vector<8x8xf32>
    %223 = arith.divf %219, %222 : vector<8x8xf32>
    %224 = vector.shape_cast %223 : vector<8x8xf32> to vector<8x8x1xf32>
    %225 = vector.broadcast %224 : vector<8x8x1xf32> to vector<8x8x32xf32>
    %226 = arith.mulf %225, %210 : vector<8x8x32xf32>
    %cst_36 = arith.constant dense<0.000000e+00> : vector<8x32xf32>
    %227 = vector.multi_reduction <add>, %226, %cst_36 [1] : vector<8x8x32xf32> to vector<8x32xf32>
    %cst_37 = arith.constant dense<0.000000e+00> : vector<8x32xf32>
    %228 = tpu.matmul %227, %2, %cst_37 {dimension_numbers = #tpu.dot_dimension_numbers<[1], [0], [0], [1], [0, 0, 1, 1], [], []>} : vector<8x32xf32>, vector<32x32xf32>, vector<8x32xf32> -> vector<8x32xf32>
    %cst_38 = arith.constant dense<0.000000e+00> : vector<8x32xf32>
    %229 = tpu.matmul %201, %3, %cst_38 {dimension_numbers = #tpu.dot_dimension_numbers<[1], [0], [0], [1], [0, 0, 1, 1], [], []>} : vector<8x32xf32>, vector<32x32xf32>, vector<8x32xf32> -> vector<8x32xf32>
    %230 = arith.addf %228, %229 : vector<8x32xf32>
    %231 = vector.broadcast %8 : vector<1x32xf32> to vector<8x32xf32>
    %232 = arith.addf %230, %231 : vector<8x32xf32>
    %233 = math.tanh %232 : vector<8x32xf32>
    %cst_39 = arith.constant dense<0.000000e+00> : vector<8x16xf32>
    %234 = tpu.matmul %233, %4, %cst_39 {dimension_numbers = #tpu.dot_dimension_numbers<[1], [0], [0], [1], [0, 0, 1, 1], [], []>} : vector<8x32xf32>, vector<32x16xf32>, vector<8x16xf32> -> vector<8x16xf32>
    %235 = vector.broadcast %9 : vector<1x16xf32> to vector<8x16xf32>
    %236 = arith.addf %234, %235 : vector<8x16xf32>
    %cst_40 = arith.constant 0.000000e+00 : f32
    %237 = vector.broadcast %cst_40 : f32 to vector<8x16xf32>
    %238 = arith.maximumf %236, %237 : vector<8x16xf32>
    %cst_41 = arith.constant dense<0.000000e+00> : vector<8x3xf32>
    %239 = tpu.matmul %238, %5, %cst_41 {dimension_numbers = #tpu.dot_dimension_numbers<[1], [0], [0], [1], [0, 0, 1, 1], [], []>} : vector<8x16xf32>, vector<16x3xf32>, vector<8x3xf32> -> vector<8x3xf32>
    %240 = vector.broadcast %10 : vector<1x3xf32> to vector<8x3xf32>
    %241 = arith.addf %239, %240 : vector<8x3xf32>
    %cst_42 = arith.constant 0.000000e+00 : f32
    %242 = vector.broadcast %cst_42 : f32 to vector<8x3xf32>
    %243 = arith.maximumf %241, %242 : vector<8x3xf32>
    %cst_43 = arith.constant 0.000000e+00 : f32
    %244 = vector.broadcast %cst_43 : f32 to vector<8x85xf32>
    %245 = tpu.concatenate %243, %233, %223, %244 in 1 : vector<8x3xf32>, vector<8x32xf32>, vector<8x8xf32>, vector<8x85xf32> -> vector<8x128xf32>
    %c0_44 = arith.constant 0 : index
    %c0_45 = arith.constant 0 : index
    %246 = vector.load %arg4[%c0_44, %c0_45] : memref<8x128xf32, #tpu.memory_space<vmem>>, vector<8x128xf32>
    tpu.vector_store %arg4[%c0_44, %c0_45], %245 {strides = array<i32>} : memref<8x128xf32, #tpu.memory_space<vmem>>, vector<8x128xf32>,
    return
  }
}

</mosaic_0001>

<llo_original>
// kernel: rnn_classifier_forward.1
$region0: #{rnn_classifier_forward.1}
  #allocation0 [shape = 'u32[]', space=smem, size = 0x4, offset = 0x4, fixed_abs, tag = 'smem constant byte address 0x4 - core index']
  #allocation1 [shape = 'u32[144,128]{1,0:T(1,128)}', space=vmem, size = 0x12000, scoped, tag = 'internal scratch']
  %s0 = inlined_call_operand.vmem [shape: f32[8,8,16], index: 0, kind: input, shape index: {}]
  %s1 = inlined_call_operand.vmem [shape: f32[48,96], index: 1, kind: input, shape index: {}]
  %s2 = inlined_call_operand.vmem [shape: f32[112,32], index: 2, kind: input, shape index: {}]
  %s3 = inlined_call_operand.vmem [shape: f32[5,128], index: 3, kind: input, shape index: {}]
  %s4 = inlined_call_operand.vmem [shape: f32[8,128], index: 4, kind: output, shape index: {}]
  %s5 = sld [smem:[#allocation0]]
  $region26: #{rnn_classifier_forward.1} parent=0
    _
  %s7 = ssub.s32 1, %s5
  %s8 = scalar_select 0, %s7, %s5
  // Predicated region
  $region2: #{rnn_classifier_forward.1} parent=0 // pred_check
    _
  $region3: #{rnn_classifier_forward.1} parent=0 // pred_check_branch
    %10 = sbr.rel (0) target = $region5
  $region4: #{rnn_classifier_forward.1} parent=0 // pred_region
    _
  $region5: #{rnn_classifier_forward.1} parent=0 // pred_fallthru
    _
  // Predicated region
  $region6: #{rnn_classifier_forward.1} parent=0 // pred_check
    _
  $region7: #{rnn_classifier_forward.1} parent=0 // pred_check_branch
    %12 = sbr.rel (0) target = $region9
  $region8: #{rnn_classifier_forward.1} parent=0 // pred_region
    _
  $region9: #{rnn_classifier_forward.1} parent=0 // pred_fallthru
    _
  // Predicated region
  $region10: #{rnn_classifier_forward.1} parent=0 // pred_check
    _
  $region11: #{rnn_classifier_forward.1} parent=0 // pred_check_branch
    %14 = sbr.rel (0) target = $region13
  $region12: #{rnn_classifier_forward.1} parent=0 // pred_region
    _
  $region13: #{rnn_classifier_forward.1} parent=0 // pred_fallthru
    _
  // Predicated region
  $region14: #{rnn_classifier_forward.1} parent=0 // pred_check
    _
  $region15: #{rnn_classifier_forward.1} parent=0 // pred_check_branch
    %16 = sbr.rel (0) target = $region17
  $region16: #{rnn_classifier_forward.1} parent=0 // pred_region
    _
  $region17: #{rnn_classifier_forward.1} parent=0 // pred_fallthru
    _
  %v17 = vld [vmem:[%s1] sm:$0xff]
  %v18 = vld [vmem:[%s1 + $0x8] sm:$0xff]
  %v19 = vld [vmem:[%s1 + $0x10] sm:$0xff]
  %v20 = vld [vmem:[%s1 + $0x18] sm:$0xff]
  %v21 = vld [vmem:[%s1 + $0x20] sm:$0xff]
  %v22 = vld [vmem:[%s1 + $0x28] sm:$0xff]
  %v23 = vld [vmem:[%s2] sm:$0xff]
  %v24 = vld [vmem:[%s2 + $0x8] sm:$0xff]
  %v25 = vld [vmem:[%s2 + $0x10] sm:$0xff]
  %v26 = vld [vmem:[%s2 + $0x18] sm:$0xff]
  %v27 = vld [vmem:[%s2 + $0x20] sm:$0xff]
  %v28 = vld [vmem:[%s2 + $0x28] sm:$0xff]
  %v29 = vld [vmem:[%s2 + $0x30] sm:$0xff]
  %v30 = vld [vmem:[%s2 + $0x38] sm:$0xff]
  %v31 = vld [vmem:[%s2 + $0x40] sm:$0xff]
  %v32 = vld [vmem:[%s2 + $0x48] sm:$0xff]
  %v33 = vld [vmem:[%s2 + $0x50] sm:$0xff]
  %v34 = vld [vmem:[%s2 + $0x58] sm:$0xff]
  %v35 = vld [vmem:[%s2 + $0x60] sm:$0xff]
  %v36 = vld [vmem:[%s2 + $0x68] sm:$0xff]
  %v37 = vld [vmem:[%s3] sm:$0x1]
  %v38 = vld [vmem:[%s3 + $0x1] sm:$0x1]
  %v39 = vld [vmem:[%s3 + $0x2] sm:$0x1]
  %v40 = vld [vmem:[%s3 + $0x3] sm:$0x1]
  %v41 = vld [vmem:[%s3 + $0x4] sm:$0x1]
  %v42 = vld [vmem:[%s0] sm:$0xff]
  %v43 = vld [vmem:[%s0 + $0x8] sm:$0xff]
  %v44 = vld [vmem:[%s0 + $0x10] sm:$0xff]
  %v45 = vld [vmem:[%s0 + $0x18] sm:$0xff]
  %v46 = vld [vmem:[%s0 + $0x20] sm:$0xff]
  %v47 = vld [vmem:[%s0 + $0x28] sm:$0xff]
  %v48 = vld [vmem:[%s0 + $0x30] sm:$0xff]
  %v49 = vld [vmem:[%s0 + $0x38] sm:$0xff]
  %v50 = vlaneseq
  %v51 = vshrl.u32 %v50, 7
  %v52 = vsub.s32 0, %v51
  %v53 = vrot.slane %v37, %v52
  %vm54 = vcmask 130048
  %v56 = vsel %vm54, %v42, 0
  %v59 = vsel %vm54, %v43, 0
  %v62 = vsel %vm54, %v44, 0
  %v65 = vsel %vm54, %v45, 0
  %v68 = vsel %vm54, %v46, 0
  %v71 = vsel %vm54, %v47, 0
  %v74 = vsel %vm54, %v48, 0
  %v77 = vsel %vm54, %v49, 0
  %79 = vmatprep.subr.mxu0 0.0
  %80 = vmatpush1.msra.mxu0 %v17
  %81 = vmatprep.subr.mxu0 0.0
  %82 = vmatpush1.msra.mxu0 %v18
  %83 = vmatprep.subr.mxu0 0.0
  %84 = vmatpush1.msra.mxu0 0.0
  %85 = vmatprep.subr.mxu0 0.0
  %86 = vmatpush1.msra.mxu0 0.0
  %87 = vmatprep.subr.mxu0 0.0
  %88 = vmatpush1.msra.mxu0 0.0
  %89 = vmatprep.subr.mxu0 0.0
  %90 = vmatpush1.msra.mxu0 0.0
  %91 = vmatprep.subr.mxu0 0.0
  %92 = vmatpush1.msra.mxu0 0.0
  %93 = vmatprep.subr.mxu0 0.0
  %94 = vmatpush1.msra.mxu0 0.0
  %95 = vmatprep.subr.mxu0 0.0
  %96 = vmatpush1.msra.mxu0 0.0
  %97 = vmatprep.subr.mxu0 0.0
  %98 = vmatpush1.msra.mxu0 0.0
  %99 = vmatprep.subr.mxu0 0.0
  %100 = vmatpush1.msra.mxu0 0.0
  %101 = vmatprep.subr.mxu0 0.0
  %102 = vmatpush1.msra.mxu0 0.0
  %103 = vmatprep.subr.mxu0 0.0
  %104 = vmatpush1.msra.mxu0 0.0
  %105 = vmatprep.subr.mxu0 0.0
  %106 = vmatpush1.msra.mxu0 0.0
  %107 = vmatprep.subr.mxu0 0.0
  %108 = vmatpush1.msra.mxu0 0.0
  %109 = vmatprep.subr.mxu0 0.0
  %110 = vmatpush1.msra.mxu0 0.0
  %111 = vmatprep.subr.mxu0 0.0
  %112 = vmatpush1.msra.mxu0 0.0
  %113 = vmatprep.subr.mxu0 0.0
  %114 = vmatpush1.msra.mxu0 0.0
  %115 = vmatprep.subr.mxu0 0.0
  %116 = vmatpush1.msra.mxu0 0.0
  %117 = vmatprep.subr.mxu0 0.0
  %118 = vmatpush1.msra.mxu0 0.0
  %119 = vmatprep.subr.mxu0 0.0
  %120 = vmatpush1.msra.mxu0 0.0
  %121 = vmatprep.subr.mxu0 0.0
  %122 = vmatpush1.msra.mxu0 0.0
  %123 = vmatprep.subr.mxu0 0.0
  %124 = vmatpush1.msra.mxu0 0.0
  %125 = vmatprep.subr.mxu0 0.0
  %126 = vmatpush1.msra.mxu0 0.0
  %127 = vmatprep.subr.mxu0 0.0
  %128 = vmatpush1.msra.mxu0 0.0
  %129 = vmatprep.subr.mxu0 0.0
  %130 = vmatpush1.msra.mxu0 0.0
  %131 = vmatprep.subr.mxu0 0.0
  %132 = vmatpush1.msra.mxu0 0.0
  %133 = vmatprep.subr.mxu0 0.0
  %134 = vmatpush1.msra.mxu0 0.0
  %135 = vmatprep.subr.mxu0 0.0
  %136 = vmatpush1.msra.mxu0 0.0
  %137 = vmatprep.subr.mxu0 0.0
  %138 = vmatpush1.msra.mxu0 0.0
  %139 = vmatprep.subr.mxu0 0.0
  %140 = vmatpush1.msra.mxu0 0.0
  %141 = vmatprep.subr.mxu0 0.0
  %142 = vmatpush1.msra.mxu0 0.0
  %143 = vmatprep.mubr.f32.mxu0 0.0
  %144 = vmatmul.mubr.f32.gmra.mrb[0].mxu0 %v56
  %v145 = vpop.f32.mrb[0].mxu0
  %v146 = vadd.f32 %v53, %v145
  %v147 = vpop.f32.mrb[0].mxu0
  %148 = vmatprep.mubr.f32.mxu0 0.0
  %149 = vmatmul.mubr.f32.gmra.mrb[0].mxu0 %v59
  %v150 = vpop.f32.mrb[0].mxu0
  %v151 = vadd.f32 %v53, %v150
  %v152 = vpop.f32.mrb[0].mxu0
  %153 = vmatprep.mubr.f32.mxu0 0.0
  %154 = vmatmul.mubr.f32.gmra.mrb[0].mxu0 %v62
  %v155 = vpop.f32.mrb[0].mxu0
  %v156 = vadd.f32 %v53, %v155
  %v157 = vpop.f32.mrb[0].mxu0
  %158 = vmatprep.mubr.f32.mxu0 0.0
  %159 = vmatmul.mubr.f32.gmra.mrb[0].mxu0 %v65
  %v160 = vpop.f32.mrb[0].mxu0
  %v161 = vadd.f32 %v53, %v160
  %v162 = vpop.f32.mrb[0].mxu0
  %163 = vmatprep.mubr.f32.mxu0 0.0
  %164 = vmatmul.mubr.f32.gmra.mrb[0].mxu0 %v68
  %v165 = vpop.f32.mrb[0].mxu0
  %v166 = vadd.f32 %v53, %v165
  %v167 = vpop.f32.mrb[0].mxu0
  %168 = vmatprep.mubr.f32.mxu0 0.0
  %169 = vmatmul.mubr.f32.gmra.mrb[0].mxu0 %v71
  %v170 = vpop.f32.mrb[0].mxu0
  %v171 = vadd.f32 %v53, %v170
  %v172 = vpop.f32.mrb[0].mxu0
  %173 = vmatprep.mubr.f32.mxu0 0.0
  %174 = vmatmul.mubr.f32.gmra.mrb[0].mxu0 %v74
  %v175 = vpop.f32.mrb[0].mxu0
  %v176 = vadd.f32 %v53, %v175
  %v177 = vpop.f32.mrb[0].mxu0
  %178 = vmatprep.mubr.f32.mxu0 0.0
  %179 = vmatmul.mubr.f32.gmra.mrb[0].mxu0 %v77
  %v180 = vpop.f32.mrb[0].mxu0
  %v181 = vadd.f32 %v53, %v180
  %v182 = vpop.f32.mrb[0].mxu0
  %183 = vdwg.mxu0
  %vm184 = vcmask 261120
  %v186 = vsel %vm184, 0.0, 0
  %188 = vmatprep.subr.mxu0 0.0
  %189 = vmatpush1.msra.mxu0 %v19
  %190 = vmatprep.subr.mxu0 0.0
  %191 = vmatpush1.msra.mxu0 %v20
  %192 = vmatprep.subr.mxu0 0.0
  %193 = vmatpush1.msra.mxu0 %v21
  %194 = vmatprep.subr.mxu0 0.0
  %195 = vmatpush1.msra.mxu0 %v22
  %196 = vmatprep.subr.mxu0 0.0
  %197 = vmatpush1.msra.mxu0 0.0
  %198 = vmatprep.subr.mxu0 0.0
  %199 = vmatpush1.msra.mxu0 0.0
  %200 = vmatprep.subr.mxu0 0.0
  %201 = vmatpush1.msra.mxu0 0.0
  %202 = vmatprep.subr.mxu0 0.0
  %203 = vmatpush1.msra.mxu0 0.0
  %204 = vmatprep.subr.mxu0 0.0
  %205 = vmatpush1.msra.mxu0 0.0
  %206 = vmatprep.subr.mxu0 0.0
  %207 = vmatpush1.msra.mxu0 0.0
  %208 = vmatprep.subr.mxu0 0.0
  %209 = vmatpush1.msra.mxu0 0.0
  %210 = vmatprep.subr.mxu0 0.0
  %211 = vmatpush1.msra.mxu0 0.0
  %212 = vmatprep.subr.mxu0 0.0
  %213 = vmatpush1.msra.mxu0 0.0
  %214 = vmatprep.subr.mxu0 0.0
  %215 = vmatpush1.msra.mxu0 0.0
  %216 = vmatprep.subr.mxu0 0.0
  %217 = vmatpush1.msra.mxu0 0.0
  %218 = vmatprep.subr.mxu0 0.0
  %219 = vmatpush1.msra.mxu0 0.0
  %220 = vmatprep.subr.mxu0 0.0
  %221 = vmatpush1.msra.mxu0 0.0
  %222 = vmatprep.subr.mxu0 0.0
  %223 = vmatpush1.msra.mxu0 0.0
  %224 = vmatprep.subr.mxu0 0.0
  %225 = vmatpush1.msra.mxu0 0.0
  %226 = vmatprep.subr.mxu0 0.0
  %227 = vmatpush1.msra.mxu0 0.0
  %228 = vmatprep.subr.mxu0 0.0
  %229 = vmatpush1.msra.mxu0 0.0
  %230 = vmatprep.subr.mxu0 0.0
  %231 = vmatpush1.msra.mxu0 0.0
  %232 = vmatprep.subr.mxu0 0.0
  %233 = vmatpush1.msra.mxu0 0.0
  %234 = vmatprep.subr.mxu0 0.0
  %235 = vmatpush1.msra.mxu0 0.0
  %236 = vmatprep.subr.mxu0 0.0
  %237 = vmatpush1.msra.mxu0 0.0
  %238 = vmatprep.subr.mxu0 0.0
  %239 = vmatpush1.msra.mxu0 0.0
  %240 = vmatprep.subr.mxu0 0.0
  %241 = vmatpush1.msra.mxu0 0.0
  %242 = vmatprep.subr.mxu0 0.0
  %243 = vmatpush1.msra.mxu0 0.0
  %244 = vmatprep.subr.mxu0 0.0
  %245 = vmatpush1.msra.mxu0 0.0
  %246 = vmatprep.subr.mxu0 0.0
  %247 = vmatpush1.msra.mxu0 0.0
  %248 = vmatprep.subr.mxu0 0.0
  %249 = vmatpush1.msra.mxu0 0.0
  %250 = vmatprep.subr.mxu0 0.0
  %251 = vmatpush1.msra.mxu0 0.0
  %252 = vmatprep.mubr.f32.mxu0 0.0
  %253 = vmatmul.mubr.f32.gmra.mrb[0].mxu0 %v186
  %v254 = vpop.f32.mrb[0].mxu0
  %v255 = vadd.f32 0.0, %v254
  %v256 = vpop.f32.mrb[0].mxu0
  %257 = vdwg.mxu0
  %v258 = vadd.f32 %v146, %v255
  %v259 = vxor.u32 %v258, 2147483648
  %v260 = vmul.f32 %v259, 1.442695
  %v261 = vpow.pop %v260
  %v262 = vadd.f32 %v261, 1.0
  %v263 = vrcp.pop %v262
  %v264 = vmul.f32 1.0, %v263
  %v265 = vlaneseq
  %v266 = vshrl.u32 %v265, 7
  %v267 = vsub.s32 0, %v266
  %v268 = vrot.slane %v38, %v267
  %270 = vrot.lane.b32.xlu0 %v268, 64
  %v271 = vpop.permute.xlu0 %270
  %v273 = vadd.f32 %v255, %v271
  %275 = vrot.lane.b32.xlu0 %v273, 64
  %v276 = vpop.permute.xlu0 %275
  %v278 = vmul.f32 %v264, %v276
  %280 = vrot.lane.b32.xlu0 %v278, 64
  %v281 = vpop.permute.xlu0 %280
  %v283 = vadd.f32 %v146, %v281
  %v284 = vtanh.pop %v283
  %v285 = vsub.f32 0.0, %v284
  %287 = vrot.lane.b32.xlu0 %v285, 96
  %v288 = vpop.permute.xlu0 %287
  %v290 = vmul.f32 %v264, %v288
  %292 = vrot.lane.b32.xlu0 %v290, 32
  %v293 = vpop.permute.xlu0 %292
  %v295 = vadd.f32 %v284, %v293
  %297 = vrot.lane.b32.xlu0 %v295, 64
  %v298 = vpop.permute.xlu0 %297
  %v299 = vsel %vm184, %v298, 0
  %301 = vmatprep.subr.mxu0 0.0
  %302 = vmatpush1.msra.mxu0 %v19
  %303 = vmatprep.subr.mxu0 0.0
  %304 = vmatpush1.msra.mxu0 %v20
  %305 = vmatprep.subr.mxu0 0.0
  %306 = vmatpush1.msra.mxu0 %v21
  %307 = vmatprep.subr.mxu0 0.0
  %308 = vmatpush1.msra.mxu0 %v22
  %309 = vmatprep.subr.mxu0 0.0
  %310 = vmatpush1.msra.mxu0 0.0
  %311 = vmatprep.subr.mxu0 0.0
  %312 = vmatpush1.msra.mxu0 0.0
  %313 = vmatprep.subr.mxu0 0.0
  %314 = vmatpush1.msra.mxu0 0.0
  %315 = vmatprep.subr.mxu0 0.0
  %316 = vmatpush1.msra.mxu0 0.0
  %317 = vmatprep.subr.mxu0 0.0
  %318 = vmatpush1.msra.mxu0 0.0
  %319 = vmatprep.subr.mxu0 0.0
  %320 = vmatpush1.msra.mxu0 0.0
  %321 = vmatprep.subr.mxu0 0.0
  %322 = vmatpush1.msra.mxu0 0.0
  %323 = vmatprep.subr.mxu0 0.0
  %324 = vmatpush1.msra.mxu0 0.0
  %325 = vmatprep.subr.mxu0 0.0
  %326 = vmatpush1.msra.mxu0 0.0
  %327 = vmatprep.subr.mxu0 0.0
  %328 = vmatpush1.msra.mxu0 0.0
  %329 = vmatprep.subr.mxu0 0.0
  %330 = vmatpush1.msra.mxu0 0.0
  %331 = vmatprep.subr.mxu0 0.0
  %332 = vmatpush1.msra.mxu0 0.0
  %333 = vmatprep.subr.mxu0 0.0
  %334 = vmatpush1.msra.mxu0 0.0
  %335 = vmatprep.subr.mxu0 0.0
  %336 = vmatpush1.msra.mxu0 0.0
  %337 = vmatprep.subr.mxu0 0.0
  %338 = vmatpush1.msra.mxu0 0.0
  %339 = vmatprep.subr.mxu0 0.0
  %340 = vmatpush1.msra.mxu0 0.0
  %341 = vmatprep.subr.mxu0 0.0
  %342 = vmatpush1.msra.mxu0 0.0
  %343 = vmatprep.subr.mxu0 0.0
  %344 = vmatpush1.msra.mxu0 0.0
  %345 = vmatprep.subr.mxu0 0.0
  %346 = vmatpush1.msra.mxu0 0.0
  %347 = vmatprep.subr.mxu0 0.0
  %348 = vmatpush1.msra.mxu0 0.0
  %349 = vmatprep.subr.mxu0 0.0
  %350 = vmatpush1.msra.mxu0 0.0
  %351 = vmatprep.subr.mxu0 0.0
  %352 = vmatpush1.msra.mxu0 0.0
  %353 = vmatprep.subr.mxu0 0.0
  %354 = vmatpush1.msra.mxu0 0.0
  %355 = vmatprep.subr.mxu0 0.0
  %356 = vmatpush1.msra.mxu0 0.0
  %357 = vmatprep.subr.mxu0 0.0
  %358 = vmatpush1.msra.mxu0 0.0
  %359 = vmatprep.subr.mxu0 0.0
  %360 = vmatpush1.msra.mxu0 0.0
  %361 = vmatprep.subr.mxu0 0.0
  %362 = vmatpush1.msra.mxu0 0.0
  %363 = vmatprep.subr.mxu0 0.0
  %364 = vmatpush1.msra.mxu0 0.0
  %365 = vmatprep.mubr.f32.mxu0 0.0
  %366 = vmatmul.mubr.f32.gmra.mrb[0].mxu0 %v299
  %v367 = vpop.f32.mrb[0].mxu0
  %v368 = vadd.f32 0.0, %v367
  %v369 = vpop.f32.mrb[0].mxu0
  %370 = vdwg.mxu0
  %v371 = vadd.f32 %v151, %v368
  %v372 = vxor.u32 %v371, 2147483648
  %v373 = vmul.f32 %v372, 1.442695
  %v374 = vpow.pop %v373
  %v375 = vadd.f32 %v374, 1.0
  %v376 = vrcp.pop %v375
  %v377 = vmul.f32 1.0, %v376
  %v378 = vadd.f32 %v368, %v271
  %380 = vrot.lane.b32.xlu0 %v378, 64
  %v381 = vpop.permute.xlu0 %380
  %v383 = vmul.f32 %v377, %v381
  %385 = vrot.lane.b32.xlu0 %v383, 64
  %v386 = vpop.permute.xlu0 %385
  %v388 = vadd.f32 %v151, %v386
  %v389 = vtanh.pop %v388
  %v390 = vsub.f32 %v295, %v389
  %392 = vrot.lane.b32.xlu0 %v390, 96
  %v393 = vpop.permute.xlu0 %392
  %v395 = vmul.f32 %v377, %v393
  %397 = vrot.lane.b32.xlu0 %v395, 32
  %v398 = vpop.permute.xlu0 %397
  %v400 = vadd.f32 %v389, %v398
  %402 = vrot.lane.b32.xlu0 %v400, 64
  %v403 = vpop.permute.xlu0 %402
  %v404 = vsel %vm184, %v403, 0
  %406 = vmatprep.subr.mxu0 0.0
  %407 = vmatpush1.msra.mxu0 %v19
  %408 = vmatprep.subr.mxu0 0.0
  %409 = vmatpush1.msra.mxu0 %v20
  %410 = vmatprep.subr.mxu0 0.0
  %411 = vmatpush1.msra.mxu0 %v21
  %412 = vmatprep.subr.mxu0 0.0
  %413 = vmatpush1.msra.mxu0 %v22
  %414 = vmatprep.subr.mxu0 0.0
  %415 = vmatpush1.msra.mxu0 0.0
  %416 = vmatprep.subr.mxu0 0.0
  %417 = vmatpush1.msra.mxu0 0.0
  %418 = vmatprep.subr.mxu0 0.0
  %419 = vmatpush1.msra.mxu0 0.0
  %420 = vmatprep.subr.mxu0 0.0
  %421 = vmatpush1.msra.mxu0 0.0
  %422 = vmatprep.subr.mxu0 0.0
  %423 = vmatpush1.msra.mxu0 0.0
  %424 = vmatprep.subr.mxu0 0.0
  %425 = vmatpush1.msra.mxu0 0.0
  %426 = vmatprep.subr.mxu0 0.0
  %427 = vmatpush1.msra.mxu0 0.0
  %428 = vmatprep.subr.mxu0 0.0
  %429 = vmatpush1.msra.mxu0 0.0
  %430 = vmatprep.subr.mxu0 0.0
  %431 = vmatpush1.msra.mxu0 0.0
  %432 = vmatprep.subr.mxu0 0.0
  %433 = vmatpush1.msra.mxu0 0.0
  %434 = vmatprep.subr.mxu0 0.0
  %435 = vmatpush1.msra.mxu0 0.0
  %436 = vmatprep.subr.mxu0 0.0
  %437 = vmatpush1.msra.mxu0 0.0
  %438 = vmatprep.subr.mxu0 0.0
  %439 = vmatpush1.msra.mxu0 0.0
  %440 = vmatprep.subr.mxu0 0.0
  %441 = vmatpush1.msra.mxu0 0.0
  %442 = vmatprep.subr.mxu0 0.0
  %443 = vmatpush1.msra.mxu0 0.0
  %444 = vmatprep.subr.mxu0 0.0
  %445 = vmatpush1.msra.mxu0 0.0
  %446 = vmatprep.subr.mxu0 0.0
  %447 = vmatpush1.msra.mxu0 0.0
  %448 = vmatprep.subr.mxu0 0.0
  %449 = vmatpush1.msra.mxu0 0.0
  %450 = vmatprep.subr.mxu0 0.0
  %451 = vmatpush1.msra.mxu0 0.0
  %452 = vmatprep.subr.mxu0 0.0
  %453 = vmatpush1.msra.mxu0 0.0
  %454 = vmatprep.subr.mxu0 0.0
  %455 = vmatpush1.msra.mxu0 0.0
  %456 = vmatprep.subr.mxu0 0.0
  %457 = vmatpush1.msra.mxu0 0.0
  %458 = vmatprep.subr.mxu0 0.0
  %459 = vmatpush1.msra.mxu0 0.0
  %460 = vmatprep.subr.mxu0 0.0
  %461 = vmatpush1.msra.mxu0 0.0
  %462 = vmatprep.subr.mxu0 0.0
  %463 = vmatpush1.msra.mxu0 0.0
  %464 = vmatprep.subr.mxu0 0.0
  %465 = vmatpush1.msra.mxu0 0.0
  %466 = vmatprep.subr.mxu0 0.0
  %467 = vmatpush1.msra.mxu0 0.0
  %468 = vmatprep.subr.mxu0 0.0
  %469 = vmatpush1.msra.mxu0 0.0
  %470 = vmatprep.mubr.f32.mxu0 0.0
  %471 = vmatmul.mubr.f32.gmra.mrb[0].mxu0 %v404
  %v472 = vpop.f32.mrb[0].mxu0
  %v473 = vadd.f32 0.0, %v472
  %v474 = vpop.f32.mrb[0].mxu0
  %475 = vdwg.mxu0
  %v476 = vadd.f32 %v156, %v473
  %v477 = vxor.u32 %v476, 2147483648
  %v478 = vmul.f32 %v477, 1.442695
  %v479 = vpow.pop %v478
  %v480 = vadd.f32 %v479, 1.0
  %v481 = vrcp.pop %v480
  %v482 = vmul.f32 1.0, %v481
  %v483 = vadd.f32 %v473, %v271
  %485 = vrot.lane.b32.xlu0 %v483, 64
  %v486 = vpop.permute.xlu0 %485
  %v488 = vmul.f32 %v482, %v486
  %490 = vrot.lane.b32.xlu0 %v488, 64
  %v491 = vpop.permute.xlu0 %490
  %v493 = vadd.f32 %v156, %v491
  %v494 = vtanh.pop %v493
  %v495 = vsub.f32 %v400, %v494
  %497 = vrot.lane.b32.xlu0 %v495, 96
  %v498 = vpop.permute.xlu0 %497
  %v500 = vmul.f32 %v482, %v498
  %502 = vrot.lane.b32.xlu0 %v500, 32
  %v503 = vpop.permute.xlu0 %502
  %v505 = vadd.f32 %v494, %v503
  %507 = vrot.lane.b32.xlu0 %v505, 64
  %v508 = vpop.permute.xlu0 %507
  %v509 = vsel %vm184, %v508, 0
  %511 = vmatprep.subr.mxu0 0.0
  %512 = vmatpush1.msra.mxu0 %v19
  %513 = vmatprep.subr.mxu0 0.0
  %514 = vmatpush1.msra.mxu0 %v20
  %515 = vmatprep.subr.mxu0 0.0
  %516 = vmatpush1.msra.mxu0 %v21
  %517 = vmatprep.subr.mxu0 0.0
  %518 = vmatpush1.msra.mxu0 %v22
  %519 = vmatprep.subr.mxu0 0.0
  %520 = vmatpush1.msra.mxu0 0.0
  %521 = vmatprep.subr.mxu0 0.0
  %522 = vmatpush1.msra.mxu0 0.0
  %523 = vmatprep.subr.mxu0 0.0
  %524 = vmatpush1.msra.mxu0 0.0
  %525 = vmatprep.subr.mxu0 0.0
  %526 = vmatpush1.msra.mxu0 0.0
  %527 = vmatprep.subr.mxu0 0.0
  %528 = vmatpush1.msra.mxu0 0.0
  %529 = vmatprep.subr.mxu0 0.0
  %530 = vmatpush1.msra.mxu0 0.0
  %531 = vmatprep.subr.mxu0 0.0
  %532 = vmatpush1.msra.mxu0 0.0
  %533 = vmatprep.subr.mxu0 0.0
  %534 = vmatpush1.msra.mxu0 0.0
  %535 = vmatprep.subr.mxu0 0.0
  %536 = vmatpush1.msra.mxu0 0.0
  %537 = vmatprep.subr.mxu0 0.0
  %538 = vmatpush1.msra.mxu0 0.0
  %539 = vmatprep.subr.mxu0 0.0
  %540 = vmatpush1.msra.mxu0 0.0
  %541 = vmatprep.subr.mxu0 0.0
  %542 = vmatpush1.msra.mxu0 0.0
  %543 = vmatprep.subr.mxu0 0.0
  %544 = vmatpush1.msra.mxu0 0.0
  %545 = vmatprep.subr.mxu0 0.0
  %546 = vmatpush1.msra.mxu0 0.0
  %547 = vmatprep.subr.mxu0 0.0
  %548 = vmatpush1.msra.mxu0 0.0
  %549 = vmatprep.subr.mxu0 0.0
  %550 = vmatpush1.msra.mxu0 0.0
  %551 = vmatprep.subr.mxu0 0.0
  %552 = vmatpush1.msra.mxu0 0.0
  %553 = vmatprep.subr.mxu0 0.0
  %554 = vmatpush1.msra.mxu0 0.0
  %555 = vmatprep.subr.mxu0 0.0
  %556 = vmatpush1.msra.mxu0 0.0
  %557 = vmatprep.subr.mxu0 0.0
  %558 = vmatpush1.msra.mxu0 0.0
  %559 = vmatprep.subr.mxu0 0.0
  %560 = vmatpush1.msra.mxu0 0.0
  %561 = vmatprep.subr.mxu0 0.0
  %562 = vmatpush1.msra.mxu0 0.0
  %563 = vmatprep.subr.mxu0 0.0
  %564 = vmatpush1.msra.mxu0 0.0
  %565 = vmatprep.subr.mxu0 0.0
  %566 = vmatpush1.msra.mxu0 0.0
  %567 = vmatprep.subr.mxu0 0.0
  %568 = vmatpush1.msra.mxu0 0.0
  %569 = vmatprep.subr.mxu0 0.0
  %570 = vmatpush1.msra.mxu0 0.0
  %571 = vmatprep.subr.mxu0 0.0
  %572 = vmatpush1.msra.mxu0 0.0
  %573 = vmatprep.subr.mxu0 0.0
  %574 = vmatpush1.msra.mxu0 0.0
  %575 = vmatprep.mubr.f32.mxu0 0.0
  %576 = vmatmul.mubr.f32.gmra.mrb[0].mxu0 %v509
  %v577 = vpop.f32.mrb[0].mxu0
  %v578 = vadd.f32 0.0, %v577
  %v579 = vpop.f32.mrb[0].mxu0
  %580 = vdwg.mxu0
  %v581 = vadd.f32 %v161, %v578
  %v582 = vxor.u32 %v581, 2147483648
  %v583 = vmul.f32 %v582, 1.442695
  %v584 = vpow.pop %v583
  %v585 = vadd.f32 %v584, 1.0
  %v586 = vrcp.pop %v585
  %v587 = vmul.f32 1.0, %v586
  %v588 = vadd.f32 %v578, %v271
  %590 = vrot.lane.b32.xlu0 %v588, 64
  %v591 = vpop.permute.xlu0 %590
  %v593 = vmul.f32 %v587, %v591
  %595 = vrot.lane.b32.xlu0 %v593, 64
  %v596 = vpop.permute.xlu0 %595
  %v598 = vadd.f32 %v161, %v596
  %v599 = vtanh.pop %v598
  %v600 = vsub.f32 %v505, %v599
  %602 = vrot.lane.b32.xlu0 %v600, 96
  %v603 = vpop.permute.xlu0 %602
  %v605 = vmul.f32 %v587, %v603
  %607 = vrot.lane.b32.xlu0 %v605, 32
  %v608 = vpop.permute.xlu0 %607
  %v610 = vadd.f32 %v599, %v608
  %612 = vrot.lane.b32.xlu0 %v610, 64
  %v613 = vpop.permute.xlu0 %612
  %v614 = vsel %vm184, %v613, 0
  %616 = vmatprep.subr.mxu0 0.0
  %617 = vmatpush1.msra.mxu0 %v19
  %618 = vmatprep.subr.mxu0 0.0
  %619 = vmatpush1.msra.mxu0 %v20
  %620 = vmatprep.subr.mxu0 0.0
  %621 = vmatpush1.msra.mxu0 %v21
  %622 = vmatprep.subr.mxu0 0.0
  %623 = vmatpush1.msra.mxu0 %v22
  %624 = vmatprep.subr.mxu0 0.0
  %625 = vmatpush1.msra.mxu0 0.0
  %626 = vmatprep.subr.mxu0 0.0
  %627 = vmatpush1.msra.mxu0 0.0
  %628 = vmatprep.subr.mxu0 0.0
  %629 = vmatpush1.msra.mxu0 0.0
  %630 = vmatprep.subr.mxu0 0.0
  %631 = vmatpush1.msra.mxu0 0.0
  %632 = vmatprep.subr.mxu0 0.0
  %633 = vmatpush1.msra.mxu0 0.0
  %634 = vmatprep.subr.mxu0 0.0
  %635 = vmatpush1.msra.mxu0 0.0
  %636 = vmatprep.subr.mxu0 0.0
  %637 = vmatpush1.msra.mxu0 0.0
  %638 = vmatprep.subr.mxu0 0.0
  %639 = vmatpush1.msra.mxu0 0.0
  %640 = vmatprep.subr.mxu0 0.0
  %641 = vmatpush1.msra.mxu0 0.0
  %642 = vmatprep.subr.mxu0 0.0
  %643 = vmatpush1.msra.mxu0 0.0
  %644 = vmatprep.subr.mxu0 0.0
  %645 = vmatpush1.msra.mxu0 0.0
  %646 = vmatprep.subr.mxu0 0.0
  %647 = vmatpush1.msra.mxu0 0.0
  %648 = vmatprep.subr.mxu0 0.0
  %649 = vmatpush1.msra.mxu0 0.0
  %650 = vmatprep.subr.mxu0 0.0
  %651 = vmatpush1.msra.mxu0 0.0
  %652 = vmatprep.subr.mxu0 0.0
  %653 = vmatpush1.msra.mxu0 0.0
  %654 = vmatprep.subr.mxu0 0.0
  %655 = vmatpush1.msra.mxu0 0.0
  %656 = vmatprep.subr.mxu0 0.0
  %657 = vmatpush1.msra.mxu0 0.0
  %658 = vmatprep.subr.mxu0 0.0
  %659 = vmatpush1.msra.mxu0 0.0
  %660 = vmatprep.subr.mxu0 0.0
  %661 = vmatpush1.msra.mxu0 0.0
  %662 = vmatprep.subr.mxu0 0.0
  %663 = vmatpush1.msra.mxu0 0.0
  %664 = vmatprep.subr.mxu0 0.0
  %665 = vmatpush1.msra.mxu0 0.0
  %666 = vmatprep.subr.mxu0 0.0
  %667 = vmatpush1.msra.mxu0 0.0
  %668 = vmatprep.subr.mxu0 0.0
  %669 = vmatpush1.msra.mxu0 0.0
  %670 = vmatprep.subr.mxu0 0.0
  %671 = vmatpush1.msra.mxu0 0.0
  %672 = vmatprep.subr.mxu0 0.0
  %673 = vmatpush1.msra.mxu0 0.0
  %674 = vmatprep.subr.mxu0 0.0
  %675 = vmatpush1.msra.mxu0 0.0
  %676 = vmatprep.subr.mxu0 0.0
  %677 = vmatpush1.msra.mxu0 0.0
  %678 = vmatprep.subr.mxu0 0.0
  %679 = vmatpush1.msra.mxu0 0.0
  %680 = vmatprep.mubr.f32.mxu0 0.0
  %681 = vmatmul.mubr.f32.gmra.mrb[0].mxu0 %v614
  %v682 = vpop.f32.mrb[0].mxu0
  %v683 = vadd.f32 0.0, %v682
  %v684 = vpop.f32.mrb[0].mxu0
  %685 = vdwg.mxu0
  %v686 = vadd.f32 %v166, %v683
  %v687 = vxor.u32 %v686, 2147483648
  %v688 = vmul.f32 %v687, 1.442695
  %v689 = vpow.pop %v688
  %v690 = vadd.f32 %v689, 1.0
  %v691 = vrcp.pop %v690
  %v692 = vmul.f32 1.0, %v691
  %v693 = vadd.f32 %v683, %v271
  %695 = vrot.lane.b32.xlu0 %v693, 64
  %v696 = vpop.permute.xlu0 %695
  %v698 = vmul.f32 %v692, %v696
  %700 = vrot.lane.b32.xlu0 %v698, 64
  %v701 = vpop.permute.xlu0 %700
  %v703 = vadd.f32 %v166, %v701
  %v704 = vtanh.pop %v703
  %v705 = vsub.f32 %v610, %v704
  %707 = vrot.lane.b32.xlu0 %v705, 96
  %v708 = vpop.permute.xlu0 %707
  %v710 = vmul.f32 %v692, %v708
  %712 = vrot.lane.b32.xlu0 %v710, 32
  %v713 = vpop.permute.xlu0 %712
  %v715 = vadd.f32 %v704, %v713
  %717 = vrot.lane.b32.xlu0 %v715, 64
  %v718 = vpop.permute.xlu0 %717
  %v719 = vsel %vm184, %v718, 0
  %721 = vmatprep.subr.mxu0 0.0
  %722 = vmatpush1.msra.mxu0 %v19
  %723 = vmatprep.subr.mxu0 0.0
  %724 = vmatpush1.msra.mxu0 %v20
  %725 = vmatprep.subr.mxu0 0.0
  %726 = vmatpush1.msra.mxu0 %v21
  %727 = vmatprep.subr.mxu0 0.0
  %728 = vmatpush1.msra.mxu0 %v22
  %729 = vmatprep.subr.mxu0 0.0
  %730 = vmatpush1.msra.mxu0 0.0
  %731 = vmatprep.subr.mxu0 0.0
  %732 = vmatpush1.msra.mxu0 0.0
  %733 = vmatprep.subr.mxu0 0.0
  %734 = vmatpush1.msra.mxu0 0.0
  %735 = vmatprep.subr.mxu0 0.0
  %736 = vmatpush1.msra.mxu0 0.0
  %737 = vmatprep.subr.mxu0 0.0
  %738 = vmatpush1.msra.mxu0 0.0
  %739 = vmatprep.subr.mxu0 0.0
  %740 = vmatpush1.msra.mxu0 0.0
  %741 = vmatprep.subr.mxu0 0.0
  %742 = vmatpush1.msra.mxu0 0.0
  %743 = vmatprep.subr.mxu0 0.0
  %744 = vmatpush1.msra.mxu0 0.0
  %745 = vmatprep.subr.mxu0 0.0
  %746 = vmatpush1.msra.mxu0 0.0
  %747 = vmatprep.subr.mxu0 0.0
  %748 = vmatpush1.msra.mxu0 0.0
  %749 = vmatprep.subr.mxu0 0.0
  %750 = vmatpush1.msra.mxu0 0.0
  %751 = vmatprep.subr.mxu0 0.0
  %752 = vmatpush1.msra.mxu0 0.0
  %753 = vmatprep.subr.mxu0 0.0
  %754 = vmatpush1.msra.mxu0 0.0
  %755 = vmatprep.subr.mxu0 0.0
  %756 = vmatpush1.msra.mxu0 0.0
  %757 = vmatprep.subr.mxu0 0.0
  %758 = vmatpush1.msra.mxu0 0.0
  %759 = vmatprep.subr.mxu0 0.0
  %760 = vmatpush1.msra.mxu0 0.0
  %761 = vmatprep.subr.mxu0 0.0
  %762 = vmatpush1.msra.mxu0 0.0
  %763 = vmatprep.subr.mxu0 0.0
  %764 = vmatpush1.msra.mxu0 0.0
  %765 = vmatprep.subr.mxu0 0.0
  %766 = vmatpush1.msra.mxu0 0.0
  %767 = vmatprep.subr.mxu0 0.0
  %768 = vmatpush1.msra.mxu0 0.0
  %769 = vmatprep.subr.mxu0 0.0
  %770 = vmatpush1.msra.mxu0 0.0
  %771 = vmatprep.subr.mxu0 0.0
  %772 = vmatpush1.msra.mxu0 0.0
  %773 = vmatprep.subr.mxu0 0.0
  %774 = vmatpush1.msra.mxu0 0.0
  %775 = vmatprep.subr.mxu0 0.0
  %776 = vmatpush1.msra.mxu0 0.0
  %777 = vmatprep.subr.mxu0 0.0
  %778 = vmatpush1.msra.mxu0 0.0
  %779 = vmatprep.subr.mxu0 0.0
  %780 = vmatpush1.msra.mxu0 0.0
  %781 = vmatprep.subr.mxu0 0.0
  %782 = vmatpush1.msra.mxu0 0.0
  %783 = vmatprep.subr.mxu0 0.0
  %784 = vmatpush1.msra.mxu0 0.0
  %785 = vmatprep.mubr.f32.mxu0 0.0
  %786 = vmatmul.mubr.f32.gmra.mrb[0].mxu0 %v719
  %v787 = vpop.f32.mrb[0].mxu0
  %v788 = vadd.f32 0.0, %v787
  %v789 = vpop.f32.mrb[0].mxu0
  %790 = vdwg.mxu0
  %v791 = vadd.f32 %v171, %v788
  %v792 = vxor.u32 %v791, 2147483648
  %v793 = vmul.f32 %v792, 1.442695
  %v794 = vpow.pop %v793
  %v795 = vadd.f32 %v794, 1.0
  %v796 = vrcp.pop %v795
  %v797 = vmul.f32 1.0, %v796
  %v798 = vadd.f32 %v788, %v271
  %800 = vrot.lane.b32.xlu0 %v798, 64
  %v801 = vpop.permute.xlu0 %800
  %v803 = vmul.f32 %v797, %v801
  %805 = vrot.lane.b32.xlu0 %v803, 64
  %v806 = vpop.permute.xlu0 %805
  %v808 = vadd.f32 %v171, %v806
  %v809 = vtanh.pop %v808
  %v810 = vsub.f32 %v715, %v809
  %812 = vrot.lane.b32.xlu0 %v810, 96
  %v813 = vpop.permute.xlu0 %812
  %v815 = vmul.f32 %v797, %v813
  %817 = vrot.lane.b32.xlu0 %v815, 32
  %v818 = vpop.permute.xlu0 %817
  %v820 = vadd.f32 %v809, %v818
  %822 = vrot.lane.b32.xlu0 %v820, 64
  %v823 = vpop.permute.xlu0 %822
  %v824 = vsel %vm184, %v823, 0
  %826 = vmatprep.subr.mxu0 0.0
  %827 = vmatpush1.msra.mxu0 %v19
  %828 = vmatprep.subr.mxu0 0.0
  %829 = vmatpush1.msra.mxu0 %v20
  %830 = vmatprep.subr.mxu0 0.0
  %831 = vmatpush1.msra.mxu0 %v21
  %832 = vmatprep.subr.mxu0 0.0
  %833 = vmatpush1.msra.mxu0 %v22
  %834 = vmatprep.subr.mxu0 0.0
  %835 = vmatpush1.msra.mxu0 0.0
  %836 = vmatprep.subr.mxu0 0.0
  %837 = vmatpush1.msra.mxu0 0.0
  %838 = vmatprep.subr.mxu0 0.0
  %839 = vmatpush1.msra.mxu0 0.0
  %840 = vmatprep.subr.mxu0 0.0
  %841 = vmatpush1.msra.mxu0 0.0
  %842 = vmatprep.subr.mxu0 0.0
  %843 = vmatpush1.msra.mxu0 0.0
  %844 = vmatprep.subr.mxu0 0.0
  %845 = vmatpush1.msra.mxu0 0.0
  %846 = vmatprep.subr.mxu0 0.0
  %847 = vmatpush1.msra.mxu0 0.0
  %848 = vmatprep.subr.mxu0 0.0
  %849 = vmatpush1.msra.mxu0 0.0
  %850 = vmatprep.subr.mxu0 0.0
  %851 = vmatpush1.msra.mxu0 0.0
  %852 = vmatprep.subr.mxu0 0.0
  %853 = vmatpush1.msra.mxu0 0.0
  %854 = vmatprep.subr.mxu0 0.0
  %855 = vmatpush1.msra.mxu0 0.0
  %856 = vmatprep.subr.mxu0 0.0
  %857 = vmatpush1.msra.mxu0 0.0
  %858 = vmatprep.subr.mxu0 0.0
  %859 = vmatpush1.msra.mxu0 0.0
  %860 = vmatprep.subr.mxu0 0.0
  %861 = vmatpush1.msra.mxu0 0.0
  %862 = vmatprep.subr.mxu0 0.0
  %863 = vmatpush1.msra.mxu0 0.0
  %864 = vmatprep.subr.mxu0 0.0
  %865 = vmatpush1.msra.mxu0 0.0
  %866 = vmatprep.subr.mxu0 0.0
  %867 = vmatpush1.msra.mxu0 0.0
  %868 = vmatprep.subr.mxu0 0.0
  %869 = vmatpush1.msra.mxu0 0.0
  %870 = vmatprep.subr.mxu0 0.0
  %871 = vmatpush1.msra.mxu0 0.0
  %872 = vmatprep.subr.mxu0 0.0
  %873 = vmatpush1.msra.mxu0 0.0
  %874 = vmatprep.subr.mxu0 0.0
  %875 = vmatpush1.msra.mxu0 0.0
  %876 = vmatprep.subr.mxu0 0.0
  %877 = vmatpush1.msra.mxu0 0.0
  %878 = vmatprep.subr.mxu0 0.0
  %879 = vmatpush1.msra.mxu0 0.0
  %880 = vmatprep.subr.mxu0 0.0
  %881 = vmatpush1.msra.mxu0 0.0
  %882 = vmatprep.subr.mxu0 0.0
  %883 = vmatpush1.msra.mxu0 0.0
  %884 = vmatprep.subr.mxu0 0.0
  %885 = vmatpush1.msra.mxu0 0.0
  %886 = vmatprep.subr.mxu0 0.0
  %887 = vmatpush1.msra.mxu0 0.0
  %888 = vmatprep.subr.mxu0 0.0
  %889 = vmatpush1.msra.mxu0 0.0
  %890 = vmatprep.mubr.f32.mxu0 0.0
  %891 = vmatmul.mubr.f32.gmra.mrb[0].mxu0 %v824
  %v892 = vpop.f32.mrb[0].mxu0
  %v893 = vadd.f32 0.0, %v892
  %v894 = vpop.f32.mrb[0].mxu0
  %895 = vdwg.mxu0
  %v896 = vadd.f32 %v176, %v893
  %v897 = vxor.u32 %v896, 2147483648
  %v898 = vmul.f32 %v897, 1.442695
  %v899 = vpow.pop %v898
  %v900 = vadd.f32 %v899, 1.0
  %v901 = vrcp.pop %v900
  %v902 = vmul.f32 1.0, %v901
  %v903 = vadd.f32 %v893, %v271
  %905 = vrot.lane.b32.xlu0 %v903, 64
  %v906 = vpop.permute.xlu0 %905
  %v908 = vmul.f32 %v902, %v906
  %910 = vrot.lane.b32.xlu0 %v908, 64
  %v911 = vpop.permute.xlu0 %910
  %v913 = vadd.f32 %v176, %v911
  %v914 = vtanh.pop %v913
  %v915 = vsub.f32 %v820, %v914
  %917 = vrot.lane.b32.xlu0 %v915, 96
  %v918 = vpop.permute.xlu0 %917
  %v920 = vmul.f32 %v902, %v918
  %922 = vrot.lane.b32.xlu0 %v920, 32
  %v923 = vpop.permute.xlu0 %922
  %v925 = vadd.f32 %v914, %v923
  %927 = vrot.lane.b32.xlu0 %v925, 64
  %v928 = vpop.permute.xlu0 %927
  %v929 = vsel %vm184, %v928, 0
  %931 = vmatprep.subr.mxu0 0.0
  %932 = vmatpush1.msra.mxu0 %v19
  %933 = vmatprep.subr.mxu0 0.0
  %934 = vmatpush1.msra.mxu0 %v20
  %935 = vmatprep.subr.mxu0 0.0
  %936 = vmatpush1.msra.mxu0 %v21
  %937 = vmatprep.subr.mxu0 0.0
  %938 = vmatpush1.msra.mxu0 %v22
  %939 = vmatprep.subr.mxu0 0.0
  %940 = vmatpush1.msra.mxu0 0.0
  %941 = vmatprep.subr.mxu0 0.0
  %942 = vmatpush1.msra.mxu0 0.0
  %943 = vmatprep.subr.mxu0 0.0
  %944 = vmatpush1.msra.mxu0 0.0
  %945 = vmatprep.subr.mxu0 0.0
  %946 = vmatpush1.msra.mxu0 0.0
  %947 = vmatprep.subr.mxu0 0.0
  %948 = vmatpush1.msra.mxu0 0.0
  %949 = vmatprep.subr.mxu0 0.0
  %950 = vmatpush1.msra.mxu0 0.0
  %951 = vmatprep.subr.mxu0 0.0
  %952 = vmatpush1.msra.mxu0 0.0
  %953 = vmatprep.subr.mxu0 0.0
  %954 = vmatpush1.msra.mxu0 0.0
  %955 = vmatprep.subr.mxu0 0.0
  %956 = vmatpush1.msra.mxu0 0.0
  %957 = vmatprep.subr.mxu0 0.0
  %958 = vmatpush1.msra.mxu0 0.0
  %959 = vmatprep.subr.mxu0 0.0
  %960 = vmatpush1.msra.mxu0 0.0
  %961 = vmatprep.subr.mxu0 0.0
  %962 = vmatpush1.msra.mxu0 0.0
  %963 = vmatprep.subr.mxu0 0.0
  %964 = vmatpush1.msra.mxu0 0.0
  %965 = vmatprep.subr.mxu0 0.0
  %966 = vmatpush1.msra.mxu0 0.0
  %967 = vmatprep.subr.mxu0 0.0
  %968 = vmatpush1.msra.mxu0 0.0
  %969 = vmatprep.subr.mxu0 0.0
  %970 = vmatpush1.msra.mxu0 0.0
  %971 = vmatprep.subr.mxu0 0.0
  %972 = vmatpush1.msra.mxu0 0.0
  %973 = vmatprep.subr.mxu0 0.0
  %974 = vmatpush1.msra.mxu0 0.0
  %975 = vmatprep.subr.mxu0 0.0
  %976 = vmatpush1.msra.mxu0 0.0
  %977 = vmatprep.subr.mxu0 0.0
  %978 = vmatpush1.msra.mxu0 0.0
  %979 = vmatprep.subr.mxu0 0.0
  %980 = vmatpush1.msra.mxu0 0.0
  %981 = vmatprep.subr.mxu0 0.0
  %982 = vmatpush1.msra.mxu0 0.0
  %983 = vmatprep.subr.mxu0 0.0
  %984 = vmatpush1.msra.mxu0 0.0
  %985 = vmatprep.subr.mxu0 0.0
  %986 = vmatpush1.msra.mxu0 0.0
  %987 = vmatprep.subr.mxu0 0.0
  %988 = vmatpush1.msra.mxu0 0.0
  %989 = vmatprep.subr.mxu0 0.0
  %990 = vmatpush1.msra.mxu0 0.0
  %991 = vmatprep.subr.mxu0 0.0
  %992 = vmatpush1.msra.mxu0 0.0
  %993 = vmatprep.subr.mxu0 0.0
  %994 = vmatpush1.msra.mxu0 0.0
  %995 = vmatprep.mubr.f32.mxu0 0.0
  %996 = vmatmul.mubr.f32.gmra.mrb[0].mxu0 %v929
  %v997 = vpop.f32.mrb[0].mxu0
  %v998 = vadd.f32 0.0, %v997
  %v999 = vpop.f32.mrb[0].mxu0
  %1000 = vdwg.mxu0
  %v1001 = vadd.f32 %v181, %v998
  %v1002 = vxor.u32 %v1001, 2147483648
  %v1003 = vmul.f32 %v1002, 1.442695
  %v1004 = vpow.pop %v1003
  %v1005 = vadd.f32 %v1004, 1.0
  %v1006 = vrcp.pop %v1005
  %v1007 = vmul.f32 1.0, %v1006
  %v1008 = vadd.f32 %v998, %v271
  %1010 = vrot.lane.b32.xlu0 %v1008, 64
  %v1011 = vpop.permute.xlu0 %1010
  %v1013 = vmul.f32 %v1007, %v1011
  %1015 = vrot.lane.b32.xlu0 %v1013, 64
  %v1016 = vpop.permute.xlu0 %1015
  %v1018 = vadd.f32 %v181, %v1016
  %v1019 = vtanh.pop %v1018
  %v1020 = vsub.f32 %v925, %v1019
  %1022 = vrot.lane.b32.xlu0 %v1020, 96
  %v1023 = vpop.permute.xlu0 %1022
  %v1025 = vmul.f32 %v1007, %v1023
  %1027 = vrot.lane.b32.xlu0 %v1025, 32
  %v1028 = vpop.permute.xlu0 %1027
  %v1030 = vadd.f32 %v1019, %v1028
  %v1031 = vcombine.high %v295, %v295
  %v1033 = vunpack.c.l.s4 1966171168
  %v1034 = vunpack.c.0.s8 %v1033
  %v1035 = vlaneseq
  %v1036 = vshrl.u32 %v1035, 7
  %v1037 = vsub.s32 %v1034, %v1036
  %v1038 = vrot.slane %v295, %v1037
  %v1040 = vunpack.c.l.s4 1966171168
  %v1041 = vunpack.c.0.s8 %v1040
  %v1042 = vlaneseq
  %v1043 = vshrl.u32 %v1042, 7
  %v1044 = vsub.s32 %v1041, %v1043
  %v1045 = vrot.slane %v1031, %v1044
  %v1046 = vcombine.high %v1038, %v1038
  %v1047 = vcombine.high %v1045, %v1045
  %v1049 = vunpack.c.l.s4 1966171168
  %v1050 = vunpack.c.0.s8 %v1049
  %v1051 = vlaneseq
  %v1052 = vshrl.u32 %v1051, 7
  %v1053 = vsub.s32 %v1050, %v1052
  %v1054 = vrot.slane %v1038, %v1053
  %v1056 = vunpack.c.l.s4 1966171168
  %v1057 = vunpack.c.0.s8 %v1056
  %v1058 = vlaneseq
  %v1059 = vshrl.u32 %v1058, 7
  %v1060 = vsub.s32 %v1057, %v1059
  %v1061 = vrot.slane %v1045, %v1060
  %v1063 = vunpack.c.l.s4 1966171168
  %v1064 = vunpack.c.0.s8 %v1063
  %v1065 = vlaneseq
  %v1066 = vshrl.u32 %v1065, 7
  %v1067 = vsub.s32 %v1064, %v1066
  %v1068 = vrot.slane %v1046, %v1067
  %v1070 = vunpack.c.l.s4 1966171168
  %v1071 = vunpack.c.0.s8 %v1070
  %v1072 = vlaneseq
  %v1073 = vshrl.u32 %v1072, 7
  %v1074 = vsub.s32 %v1071, %v1073
  %v1075 = vrot.slane %v1047, %v1074
  %v1076 = vcombine.high %v1054, %v1054
  %v1077 = vcombine.high %v1061, %v1061
  %v1078 = vcombine.high %v1068, %v1068
  %v1079 = vcombine.high %v1075, %v1075
  %v1088 = vcombine.high %v400, %v400
  %v1090 = vunpack.c.l.s4 1966171168
  %v1091 = vunpack.c.0.s8 %v1090
  %v1092 = vlaneseq
  %v1093 = vshrl.u32 %v1092, 7
  %v1094 = vsub.s32 %v1091, %v1093
  %v1095 = vrot.slane %v400, %v1094
  %v1097 = vunpack.c.l.s4 1966171168
  %v1098 = vunpack.c.0.s8 %v1097
  %v1099 = vlaneseq
  %v1100 = vshrl.u32 %v1099, 7
  %v1101 = vsub.s32 %v1098, %v1100
  %v1102 = vrot.slane %v1088, %v1101
  %v1103 = vcombine.high %v1095, %v1095
  %v1104 = vcombine.high %v1102, %v1102
  %v1106 = vunpack.c.l.s4 1966171168
  %v1107 = vunpack.c.0.s8 %v1106
  %v1108 = vlaneseq
  %v1109 = vshrl.u32 %v1108, 7
  %v1110 = vsub.s32 %v1107, %v1109
  %v1111 = vrot.slane %v1095, %v1110
  %v1113 = vunpack.c.l.s4 1966171168
  %v1114 = vunpack.c.0.s8 %v1113
  %v1115 = vlaneseq
  %v1116 = vshrl.u32 %v1115, 7
  %v1117 = vsub.s32 %v1114, %v1116
  %v1118 = vrot.slane %v1102, %v1117
  %v1120 = vunpack.c.l.s4 1966171168
  %v1121 = vunpack.c.0.s8 %v1120
  %v1122 = vlaneseq
  %v1123 = vshrl.u32 %v1122, 7
  %v1124 = vsub.s32 %v1121, %v1123
  %v1125 = vrot.slane %v1103, %v1124
  %v1127 = vunpack.c.l.s4 1966171168
  %v1128 = vunpack.c.0.s8 %v1127
  %v1129 = vlaneseq
  %v1130 = vshrl.u32 %v1129, 7
  %v1131 = vsub.s32 %v1128, %v1130
  %v1132 = vrot.slane %v1104, %v1131
  %v1133 = vcombine.high %v1111, %v1111
  %v1134 = vcombine.high %v1118, %v1118
  %v1135 = vcombine.high %v1125, %v1125
  %v1136 = vcombine.high %v1132, %v1132
  %v1137 = vcombine.high %v505, %v505
  %v1139 = vunpack.c.l.s4 1966171168
  %v1140 = vunpack.c.0.s8 %v1139
  %v1141 = vlaneseq
  %v1142 = vshrl.u32 %v1141, 7
  %v1143 = vsub.s32 %v1140, %v1142
  %v1144 = vrot.slane %v505, %v1143
  %v1146 = vunpack.c.l.s4 1966171168
  %v1147 = vunpack.c.0.s8 %v1146
  %v1148 = vlaneseq
  %v1149 = vshrl.u32 %v1148, 7
  %v1150 = vsub.s32 %v1147, %v1149
  %v1151 = vrot.slane %v1137, %v1150
  %v1152 = vcombine.high %v1144, %v1144
  %v1153 = vcombine.high %v1151, %v1151
  %v1155 = vunpack.c.l.s4 1966171168
  %v1156 = vunpack.c.0.s8 %v1155
  %v1157 = vlaneseq
  %v1158 = vshrl.u32 %v1157, 7
  %v1159 = vsub.s32 %v1156, %v1158
  %v1160 = vrot.slane %v1144, %v1159
  %v1162 = vunpack.c.l.s4 1966171168
  %v1163 = vunpack.c.0.s8 %v1162
  %v1164 = vlaneseq
  %v1165 = vshrl.u32 %v1164, 7
  %v1166 = vsub.s32 %v1163, %v1165
  %v1167 = vrot.slane %v1151, %v1166
  %v1169 = vunpack.c.l.s4 1966171168
  %v1170 = vunpack.c.0.s8 %v1169
  %v1171 = vlaneseq
  %v1172 = vshrl.u32 %v1171, 7
  %v1173 = vsub.s32 %v1170, %v1172
  %v1174 = vrot.slane %v1152, %v1173
  %v1176 = vunpack.c.l.s4 1966171168
  %v1177 = vunpack.c.0.s8 %v1176
  %v1178 = vlaneseq
  %v1179 = vshrl.u32 %v1178, 7
  %v1180 = vsub.s32 %v1177, %v1179
  %v1181 = vrot.slane %v1153, %v1180
  %v1182 = vcombine.high %v1160, %v1160
  %v1183 = vcombine.high %v1167, %v1167
  %v1184 = vcombine.high %v1174, %v1174
  %v1185 = vcombine.high %v1181, %v1181
  %v1186 = vcombine.high %v610, %v610
  %v1188 = vunpack.c.l.s4 1966171168
  %v1189 = vunpack.c.0.s8 %v1188
  %v1190 = vlaneseq
  %v1191 = vshrl.u32 %v1190, 7
  %v1192 = vsub.s32 %v1189, %v1191
  %v1193 = vrot.slane %v610, %v1192
  %v1195 = vunpack.c.l.s4 1966171168
  %v1196 = vunpack.c.0.s8 %v1195
  %v1197 = vlaneseq
  %v1198 = vshrl.u32 %v1197, 7
  %v1199 = vsub.s32 %v1196, %v1198
  %v1200 = vrot.slane %v1186, %v1199
  %v1201 = vcombine.high %v1193, %v1193
  %v1202 = vcombine.high %v1200, %v1200
  %v1204 = vunpack.c.l.s4 1966171168
  %v1205 = vunpack.c.0.s8 %v1204
  %v1206 = vlaneseq
  %v1207 = vshrl.u32 %v1206, 7
  %v1208 = vsub.s32 %v1205, %v1207
  %v1209 = vrot.slane %v1193, %v1208
  %v1211 = vunpack.c.l.s4 1966171168
  %v1212 = vunpack.c.0.s8 %v1211
  %v1213 = vlaneseq
  %v1214 = vshrl.u32 %v1213, 7
  %v1215 = vsub.s32 %v1212, %v1214
  %v1216 = vrot.slane %v1200, %v1215
  %v1218 = vunpack.c.l.s4 1966171168
  %v1219 = vunpack.c.0.s8 %v1218
  %v1220 = vlaneseq
  %v1221 = vshrl.u32 %v1220, 7
  %v1222 = vsub.s32 %v1219, %v1221
  %v1223 = vrot.slane %v1201, %v1222
  %v1225 = vunpack.c.l.s4 1966171168
  %v1226 = vunpack.c.0.s8 %v1225
  %v1227 = vlaneseq
  %v1228 = vshrl.u32 %v1227, 7
  %v1229 = vsub.s32 %v1226, %v1228
  %v1230 = vrot.slane %v1202, %v1229
  %v1231 = vcombine.high %v1209, %v1209
  %v1232 = vcombine.high %v1216, %v1216
  %v1233 = vcombine.high %v1223, %v1223
  %v1234 = vcombine.high %v1230, %v1230
  %v1235 = vcombine.high %v715, %v715
  %v1237 = vunpack.c.l.s4 1966171168
  %v1238 = vunpack.c.0.s8 %v1237
  %v1239 = vlaneseq
  %v1240 = vshrl.u32 %v1239, 7
  %v1241 = vsub.s32 %v1238, %v1240
  %v1242 = vrot.slane %v715, %v1241
  %v1244 = vunpack.c.l.s4 1966171168
  %v1245 = vunpack.c.0.s8 %v1244
  %v1246 = vlaneseq
  %v1247 = vshrl.u32 %v1246, 7
  %v1248 = vsub.s32 %v1245, %v1247
  %v1249 = vrot.slane %v1235, %v1248
  %v1250 = vcombine.high %v1242, %v1242
  %v1251 = vcombine.high %v1249, %v1249
  %v1253 = vunpack.c.l.s4 1966171168
  %v1254 = vunpack.c.0.s8 %v1253
  %v1255 = vlaneseq
  %v1256 = vshrl.u32 %v1255, 7
  %v1257 = vsub.s32 %v1254, %v1256
  %v1258 = vrot.slane %v1242, %v1257
  %v1260 = vunpack.c.l.s4 1966171168
  %v1261 = vunpack.c.0.s8 %v1260
  %v1262 = vlaneseq
  %v1263 = vshrl.u32 %v1262, 7
  %v1264 = vsub.s32 %v1261, %v1263
  %v1265 = vrot.slane %v1249, %v1264
  %v1267 = vunpack.c.l.s4 1966171168
  %v1268 = vunpack.c.0.s8 %v1267
  %v1269 = vlaneseq
  %v1270 = vshrl.u32 %v1269, 7
  %v1271 = vsub.s32 %v1268, %v1270
  %v1272 = vrot.slane %v1250, %v1271
  %v1274 = vunpack.c.l.s4 1966171168
  %v1275 = vunpack.c.0.s8 %v1274
  %v1276 = vlaneseq
  %v1277 = vshrl.u32 %v1276, 7
  %v1278 = vsub.s32 %v1275, %v1277
  %v1279 = vrot.slane %v1251, %v1278
  %v1280 = vcombine.high %v1258, %v1258
  %v1281 = vcombine.high %v1265, %v1265
  %v1282 = vcombine.high %v1272, %v1272
  %v1283 = vcombine.high %v1279, %v1279
  %v1284 = vcombine.high %v820, %v820
  %v1286 = vunpack.c.l.s4 1966171168
  %v1287 = vunpack.c.0.s8 %v1286
  %v1288 = vlaneseq
  %v1289 = vshrl.u32 %v1288, 7
  %v1290 = vsub.s32 %v1287, %v1289
  %v1291 = vrot.slane %v820, %v1290
  %v1293 = vunpack.c.l.s4 1966171168
  %v1294 = vunpack.c.0.s8 %v1293
  %v1295 = vlaneseq
  %v1296 = vshrl.u32 %v1295, 7
  %v1297 = vsub.s32 %v1294, %v1296
  %v1298 = vrot.slane %v1284, %v1297
  %v1299 = vcombine.high %v1291, %v1291
  %v1300 = vcombine.high %v1298, %v1298
  %v1302 = vunpack.c.l.s4 1966171168
  %v1303 = vunpack.c.0.s8 %v1302
  %v1304 = vlaneseq
  %v1305 = vshrl.u32 %v1304, 7
  %v1306 = vsub.s32 %v1303, %v1305
  %v1307 = vrot.slane %v1291, %v1306
  %v1309 = vunpack.c.l.s4 1966171168
  %v1310 = vunpack.c.0.s8 %v1309
  %v1311 = vlaneseq
  %v1312 = vshrl.u32 %v1311, 7
  %v1313 = vsub.s32 %v1310, %v1312
  %v1314 = vrot.slane %v1298, %v1313
  %v1316 = vunpack.c.l.s4 1966171168
  %v1317 = vunpack.c.0.s8 %v1316
  %v1318 = vlaneseq
  %v1319 = vshrl.u32 %v1318, 7
  %v1320 = vsub.s32 %v1317, %v1319
  %v1321 = vrot.slane %v1299, %v1320
  %v1323 = vunpack.c.l.s4 1966171168
  %v1324 = vunpack.c.0.s8 %v1323
  %v1325 = vlaneseq
  %v1326 = vshrl.u32 %v1325, 7
  %v1327 = vsub.s32 %v1324, %v1326
  %v1328 = vrot.slane %v1300, %v1327
  %v1329 = vcombine.high %v1307, %v1307
  %v1330 = vcombine.high %v1314, %v1314
  %v1331 = vcombine.high %v1321, %v1321
  %v1332 = vcombine.high %v1328, %v1328
  %v1333 = vcombine.high %v925, %v925
  %v1335 = vunpack.c.l.s4 1966171168
  %v1336 = vunpack.c.0.s8 %v1335
  %v1337 = vlaneseq
  %v1338 = vshrl.u32 %v1337, 7
  %v1339 = vsub.s32 %v1336, %v1338
  %v1340 = vrot.slane %v925, %v1339
  %v1342 = vunpack.c.l.s4 1966171168
  %v1343 = vunpack.c.0.s8 %v1342
  %v1344 = vlaneseq
  %v1345 = vshrl.u32 %v1344, 7
  %v1346 = vsub.s32 %v1343, %v1345
  %v1347 = vrot.slane %v1333, %v1346
  %v1348 = vcombine.high %v1340, %v1340
  %v1349 = vcombine.high %v1347, %v1347
  %v1351 = vunpack.c.l.s4 1966171168
  %v1352 = vunpack.c.0.s8 %v1351
  %v1353 = vlaneseq
  %v1354 = vshrl.u32 %v1353, 7
  %v1355 = vsub.s32 %v1352, %v1354
  %v1356 = vrot.slane %v1340, %v1355
  %v1358 = vunpack.c.l.s4 1966171168
  %v1359 = vunpack.c.0.s8 %v1358
  %v1360 = vlaneseq
  %v1361 = vshrl.u32 %v1360, 7
  %v1362 = vsub.s32 %v1359, %v1361
  %v1363 = vrot.slane %v1347, %v1362
  %v1365 = vunpack.c.l.s4 1966171168
  %v1366 = vunpack.c.0.s8 %v1365
  %v1367 = vlaneseq
  %v1368 = vshrl.u32 %v1367, 7
  %v1369 = vsub.s32 %v1366, %v1368
  %v1370 = vrot.slane %v1348, %v1369
  %v1372 = vunpack.c.l.s4 1966171168
  %v1373 = vunpack.c.0.s8 %v1372
  %v1374 = vlaneseq
  %v1375 = vshrl.u32 %v1374, 7
  %v1376 = vsub.s32 %v1373, %v1375
  %v1377 = vrot.slane %v1349, %v1376
  %v1378 = vcombine.high %v1356, %v1356
  %v1379 = vcombine.high %v1363, %v1363
  %v1380 = vcombine.high %v1370, %v1370
  %v1381 = vcombine.high %v1377, %v1377
  %v1383 = vcombine.high %v1030, %v1030
  %v1385 = vunpack.c.l.s4 1966171168
  %v1386 = vunpack.c.0.s8 %v1385
  %v1387 = vlaneseq
  %v1388 = vshrl.u32 %v1387, 7
  %v1389 = vsub.s32 %v1386, %v1388
  %v1390 = vrot.slane %v1030, %v1389
  %v1392 = vunpack.c.l.s4 1966171168
  %v1393 = vunpack.c.0.s8 %v1392
  %v1394 = vlaneseq
  %v1395 = vshrl.u32 %v1394, 7
  %v1396 = vsub.s32 %v1393, %v1395
  %v1397 = vrot.slane %v1383, %v1396
  %v1398 = vcombine.high %v1390, %v1390
  %v1399 = vcombine.high %v1397, %v1397
  %v1401 = vunpack.c.l.s4 1966171168
  %v1402 = vunpack.c.0.s8 %v1401
  %v1403 = vlaneseq
  %v1404 = vshrl.u32 %v1403, 7
  %v1405 = vsub.s32 %v1402, %v1404
  %v1406 = vrot.slane %v1390, %v1405
  %v1408 = vunpack.c.l.s4 1966171168
  %v1409 = vunpack.c.0.s8 %v1408
  %v1410 = vlaneseq
  %v1411 = vshrl.u32 %v1410, 7
  %v1412 = vsub.s32 %v1409, %v1411
  %v1413 = vrot.slane %v1397, %v1412
  %v1415 = vunpack.c.l.s4 1966171168
  %v1416 = vunpack.c.0.s8 %v1415
  %v1417 = vlaneseq
  %v1418 = vshrl.u32 %v1417, 7
  %v1419 = vsub.s32 %v1416, %v1418
  %v1420 = vrot.slane %v1398, %v1419
  %v1422 = vunpack.c.l.s4 1966171168
  %v1423 = vunpack.c.0.s8 %v1422
  %v1424 = vlaneseq
  %v1425 = vshrl.u32 %v1424, 7
  %v1426 = vsub.s32 %v1423, %v1425
  %v1427 = vrot.slane %v1399, %v1426
  %v1428 = vcombine.high %v1406, %v1406
  %v1429 = vcombine.high %v1413, %v1413
  %v1430 = vcombine.high %v1420, %v1420
  %v1431 = vcombine.high %v1427, %v1427
  %v1432 = vlaneseq
  %v1433 = vshrl.u32 %v1432, 7
  %v1434 = vsub.s32 0, %v1433
  %v1435 = vrot.slane %v1111, %v1434
  %v1436 = vlaneseq
  %v1437 = vshrl.u32 %v1436, 7
  %v1438 = vsub.s32 0, %v1437
  %v1439 = vrot.slane %v1125, %v1438
  %v1440 = vlaneseq
  %v1441 = vshrl.u32 %v1440, 7
  %v1442 = vsub.s32 0, %v1441
  %v1443 = vrot.slane %v1133, %v1442
  %v1444 = vlaneseq
  %v1445 = vshrl.u32 %v1444, 7
  %v1446 = vsub.s32 0, %v1445
  %v1447 = vrot.slane %v1135, %v1446
  %v1448 = vlaneseq
  %v1449 = vshrl.u32 %v1448, 7
  %v1450 = vsub.s32 0, %v1449
  %v1451 = vrot.slane %v1118, %v1450
  %v1452 = vlaneseq
  %v1453 = vshrl.u32 %v1452, 7
  %v1454 = vsub.s32 0, %v1453
  %v1455 = vrot.slane %v1132, %v1454
  %v1456 = vlaneseq
  %v1457 = vshrl.u32 %v1456, 7
  %v1458 = vsub.s32 0, %v1457
  %v1459 = vrot.slane %v1134, %v1458
  %v1460 = vlaneseq
  %v1461 = vshrl.u32 %v1460, 7
  %v1462 = vsub.s32 0, %v1461
  %v1463 = vrot.slane %v1136, %v1462
  %v1472 = vlaneseq
  %v1473 = vshrl.u32 %v1472, 7
  %v1474 = vsub.s32 0, %v1473
  %v1475 = vrot.slane %v1160, %v1474
  %v1476 = vlaneseq
  %v1477 = vshrl.u32 %v1476, 7
  %v1478 = vsub.s32 0, %v1477
  %v1479 = vrot.slane %v1174, %v1478
  %v1480 = vlaneseq
  %v1481 = vshrl.u32 %v1480, 7
  %v1482 = vsub.s32 0, %v1481
  %v1483 = vrot.slane %v1182, %v1482
  %v1484 = vlaneseq
  %v1485 = vshrl.u32 %v1484, 7
  %v1486 = vsub.s32 0, %v1485
  %v1487 = vrot.slane %v1184, %v1486
  %v1488 = vlaneseq
  %v1489 = vshrl.u32 %v1488, 7
  %v1490 = vsub.s32 0, %v1489
  %v1491 = vrot.slane %v1167, %v1490
  %v1492 = vlaneseq
  %v1493 = vshrl.u32 %v1492, 7
  %v1494 = vsub.s32 0, %v1493
  %v1495 = vrot.slane %v1181, %v1494
  %v1496 = vlaneseq
  %v1497 = vshrl.u32 %v1496, 7
  %v1498 = vsub.s32 0, %v1497
  %v1499 = vrot.slane %v1183, %v1498
  %v1500 = vlaneseq
  %v1501 = vshrl.u32 %v1500, 7
  %v1502 = vsub.s32 0, %v1501
  %v1503 = vrot.slane %v1185, %v1502
  %v1512 = vlaneseq
  %v1513 = vshrl.u32 %v1512, 7
  %v1514 = vsub.s32 0, %v1513
  %v1515 = vrot.slane %v1209, %v1514
  %v1516 = vlaneseq
  %v1517 = vshrl.u32 %v1516, 7
  %v1518 = vsub.s32 0, %v1517
  %v1519 = vrot.slane %v1223, %v1518
  %v1520 = vlaneseq
  %v1521 = vshrl.u32 %v1520, 7
  %v1522 = vsub.s32 0, %v1521
  %v1523 = vrot.slane %v1231, %v1522
  %v1524 = vlaneseq
  %v1525 = vshrl.u32 %v1524, 7
  %v1526 = vsub.s32 0, %v1525
  %v1527 = vrot.slane %v1233, %v1526
  %v1528 = vlaneseq
  %v1529 = vshrl.u32 %v1528, 7
  %v1530 = vsub.s32 0, %v1529
  %v1531 = vrot.slane %v1216, %v1530
  %v1532 = vlaneseq
  %v1533 = vshrl.u32 %v1532, 7
  %v1534 = vsub.s32 0, %v1533
  %v1535 = vrot.slane %v1230, %v1534
  %v1536 = vlaneseq
  %v1537 = vshrl.u32 %v1536, 7
  %v1538 = vsub.s32 0, %v1537
  %v1539 = vrot.slane %v1232, %v1538
  %v1540 = vlaneseq
  %v1541 = vshrl.u32 %v1540, 7
  %v1542 = vsub.s32 0, %v1541
  %v1543 = vrot.slane %v1234, %v1542
  %v1552 = vlaneseq
  %v1553 = vshrl.u32 %v1552, 7
  %v1554 = vsub.s32 0, %v1553
  %v1555 = vrot.slane %v1258, %v1554
  %v1556 = vlaneseq
  %v1557 = vshrl.u32 %v1556, 7
  %v1558 = vsub.s32 0, %v1557
  %v1559 = vrot.slane %v1272, %v1558
  %v1560 = vlaneseq
  %v1561 = vshrl.u32 %v1560, 7
  %v1562 = vsub.s32 0, %v1561
  %v1563 = vrot.slane %v1280, %v1562
  %v1564 = vlaneseq
  %v1565 = vshrl.u32 %v1564, 7
  %v1566 = vsub.s32 0, %v1565
  %v1567 = vrot.slane %v1282, %v1566
  %v1568 = vlaneseq
  %v1569 = vshrl.u32 %v1568, 7
  %v1570 = vsub.s32 0, %v1569
  %v1571 = vrot.slane %v1265, %v1570
  %v1572 = vlaneseq
  %v1573 = vshrl.u32 %v1572, 7
  %v1574 = vsub.s32 0, %v1573
  %v1575 = vrot.slane %v1279, %v1574
  %v1576 = vlaneseq
  %v1577 = vshrl.u32 %v1576, 7
  %v1578 = vsub.s32 0, %v1577
  %v1579 = vrot.slane %v1281, %v1578
  %v1580 = vlaneseq
  %v1581 = vshrl.u32 %v1580, 7
  %v1582 = vsub.s32 0, %v1581
  %v1583 = vrot.slane %v1283, %v1582
  %v1592 = vlaneseq
  %v1593 = vshrl.u32 %v1592, 7
  %v1594 = vsub.s32 0, %v1593
  %v1595 = vrot.slane %v1307, %v1594
  %v1596 = vlaneseq
  %v1597 = vshrl.u32 %v1596, 7
  %v1598 = vsub.s32 0, %v1597
  %v1599 = vrot.slane %v1321, %v1598
  %v1600 = vlaneseq
  %v1601 = vshrl.u32 %v1600, 7
  %v1602 = vsub.s32 0, %v1601
  %v1603 = vrot.slane %v1329, %v1602
  %v1604 = vlaneseq
  %v1605 = vshrl.u32 %v1604, 7
  %v1606 = vsub.s32 0, %v1605
  %v1607 = vrot.slane %v1331, %v1606
  %v1608 = vlaneseq
  %v1609 = vshrl.u32 %v1608, 7
  %v1610 = vsub.s32 0, %v1609
  %v1611 = vrot.slane %v1314, %v1610
  %v1612 = vlaneseq
  %v1613 = vshrl.u32 %v1612, 7
  %v1614 = vsub.s32 0, %v1613
  %v1615 = vrot.slane %v1328, %v1614
  %v1616 = vlaneseq
  %v1617 = vshrl.u32 %v1616, 7
  %v1618 = vsub.s32 0, %v1617
  %v1619 = vrot.slane %v1330, %v1618
  %v1620 = vlaneseq
  %v1621 = vshrl.u32 %v1620, 7
  %v1622 = vsub.s32 0, %v1621
  %v1623 = vrot.slane %v1332, %v1622
  %v1632 = vlaneseq
  %v1633 = vshrl.u32 %v1632, 7
  %v1634 = vsub.s32 0, %v1633
  %v1635 = vrot.slane %v1356, %v1634
  %v1636 = vlaneseq
  %v1637 = vshrl.u32 %v1636, 7
  %v1638 = vsub.s32 0, %v1637
  %v1639 = vrot.slane %v1370, %v1638
  %v1640 = vlaneseq
  %v1641 = vshrl.u32 %v1640, 7
  %v1642 = vsub.s32 0, %v1641
  %v1643 = vrot.slane %v1378, %v1642
  %v1644 = vlaneseq
  %v1645 = vshrl.u32 %v1644, 7
  %v1646 = vsub.s32 0, %v1645
  %v1647 = vrot.slane %v1380, %v1646
  %v1648 = vlaneseq
  %v1649 = vshrl.u32 %v1648, 7
  %v1650 = vsub.s32 0, %v1649
  %v1651 = vrot.slane %v1363, %v1650
  %v1652 = vlaneseq
  %v1653 = vshrl.u32 %v1652, 7
  %v1654 = vsub.s32 0, %v1653
  %v1655 = vrot.slane %v1377, %v1654
  %v1656 = vlaneseq
  %v1657 = vshrl.u32 %v1656, 7
  %v1658 = vsub.s32 0, %v1657
  %v1659 = vrot.slane %v1379, %v1658
  %v1660 = vlaneseq
  %v1661 = vshrl.u32 %v1660, 7
  %v1662 = vsub.s32 0, %v1661
  %v1663 = vrot.slane %v1381, %v1662
  %v1672 = vlaneseq
  %v1673 = vshrl.u32 %v1672, 7
  %v1674 = vsub.s32 0, %v1673
  %v1675 = vrot.slane %v1406, %v1674
  %v1676 = vlaneseq
  %v1677 = vshrl.u32 %v1676, 7
  %v1678 = vsub.s32 0, %v1677
  %v1679 = vrot.slane %v1420, %v1678
  %v1680 = vlaneseq
  %v1681 = vshrl.u32 %v1680, 7
  %v1682 = vsub.s32 0, %v1681
  %v1683 = vrot.slane %v1428, %v1682
  %v1684 = vlaneseq
  %v1685 = vshrl.u32 %v1684, 7
  %v1686 = vsub.s32 0, %v1685
  %v1687 = vrot.slane %v1430, %v1686
  %v1688 = vlaneseq
  %v1689 = vshrl.u32 %v1688, 7
  %v1690 = vsub.s32 0, %v1689
  %v1691 = vrot.slane %v1413, %v1690
  %v1692 = vlaneseq
  %v1693 = vshrl.u32 %v1692, 7
  %v1694 = vsub.s32 0, %v1693
  %v1695 = vrot.slane %v1427, %v1694
  %v1696 = vlaneseq
  %v1697 = vshrl.u32 %v1696, 7
  %v1698 = vsub.s32 0, %v1697
  %v1699 = vrot.slane %v1429, %v1698
  %v1700 = vlaneseq
  %v1701 = vshrl.u32 %v1700, 7
  %v1702 = vsub.s32 0, %v1701
  %v1703 = vrot.slane %v1431, %v1702
  %vm1712 = vcmask 1040384
  %v1713 = vsel %vm1712, %v1054, %v1435
  %v1714 = vsel %vm1712, %v1068, %v1439
  %v1715 = vsel %vm1712, %v1076, %v1443
  %v1716 = vsel %vm1712, %v1078, %v1447
  %v1717 = vsel %vm1712, %v1061, %v1451
  %v1718 = vsel %vm1712, %v1075, %v1455
  %v1719 = vsel %vm1712, %v1077, %v1459
  %v1720 = vsel %vm1712, %v1079, %v1463
  %vm1721 = vcmask 1041408
  %v1722 = vsel %vm1721, %v1713, %v1475
  %v1723 = vsel %vm1721, %v1714, %v1479
  %v1724 = vsel %vm1721, %v1715, %v1483
  %v1725 = vsel %vm1721, %v1716, %v1487
  %v1726 = vsel %vm1721, %v1717, %v1491
  %v1727 = vsel %vm1721, %v1718, %v1495
  %v1728 = vsel %vm1721, %v1719, %v1499
  %v1729 = vsel %vm1721, %v1720, %v1503
  %vm1730 = vcmask 1042432
  %v1731 = vsel %vm1730, %v1722, %v1515
  %v1732 = vsel %vm1730, %v1723, %v1519
  %v1733 = vsel %vm1730, %v1724, %v1523
  %v1734 = vsel %vm1730, %v1725, %v1527
  %v1735 = vsel %vm1730, %v1726, %v1531
  %v1736 = vsel %vm1730, %v1727, %v1535
  %v1737 = vsel %vm1730, %v1728, %v1539
  %v1738 = vsel %vm1730, %v1729, %v1543
  %vm1739 = vcmask 1043456
  %v1740 = vsel %vm1739, %v1731, %v1555
  %v1741 = vsel %vm1739, %v1732, %v1559
  %v1742 = vsel %vm1739, %v1733, %v1563
  %v1743 = vsel %vm1739, %v1734, %v1567
  %v1744 = vsel %vm1739, %v1735, %v1571
  %v1745 = vsel %vm1739, %v1736, %v1575
  %v1746 = vsel %vm1739, %v1737, %v1579
  %v1747 = vsel %vm1739, %v1738, %v1583
  %vm1748 = vcmask 1044480
  %v1749 = vsel %vm1748, %v1740, %v1595
  %v1750 = vsel %vm1748, %v1741, %v1599
  %v1751 = vsel %vm1748, %v1742, %v1603
  %v1752 = vsel %vm1748, %v1743, %v1607
  %v1753 = vsel %vm1748, %v1744, %v1611
  %v1754 = vsel %vm1748, %v1745, %v1615
  %v1755 = vsel %vm1748, %v1746, %v1619
  %v1756 = vsel %vm1748, %v1747, %v1623
  %vm1757 = vcmask 1045504
  %v1758 = vsel %vm1757, %v1749, %v1635
  %v1759 = vsel %vm1757, %v1750, %v1639
  %v1760 = vsel %vm1757, %v1751, %v1643
  %v1761 = vsel %vm1757, %v1752, %v1647
  %v1762 = vsel %vm1757, %v1753, %v1651
  %v1763 = vsel %vm1757, %v1754, %v1655
  %v1764 = vsel %vm1757, %v1755, %v1659
  %v1765 = vsel %vm1757, %v1756, %v1663
  %vm1766 = vcmask 1046528
  %v1767 = vsel %vm1766, %v1758, %v1675
  %v1768 = vsel %vm1766, %v1759, %v1679
  %v1769 = vsel %vm1766, %v1760, %v1683
  %v1770 = vsel %vm1766, %v1761, %v1687
  %v1771 = vsel %vm1766, %v1762, %v1691
  %v1772 = vsel %vm1766, %v1763, %v1695
  %v1773 = vsel %vm1766, %v1764, %v1699
  %v1774 = vsel %vm1766, %v1765, %v1703
  %v1775 = vmul.f32 %v1767, %v1675
  %v1776 = vmul.f32 %v1768, %v1679
  %v1777 = vmul.f32 %v1769, %v1683
  %v1778 = vmul.f32 %v1770, %v1687
  %v1779 = vmul.f32 %v1771, %v1691
  %v1780 = vmul.f32 %v1772, %v1695
  %v1781 = vmul.f32 %v1773, %v1699
  %v1782 = vmul.f32 %v1774, %v1703
  %1791 = vrot.lane.b32.xlu0 %v1775, 64
  %v1792 = vpop.permute.xlu0 %1791
  %1793 = vrot.lane.b32.xlu0 %v1776, 64
  %v1794 = vpop.permute.xlu0 %1793
  %1795 = vrot.lane.b32.xlu0 %v1777, 64
  %v1796 = vpop.permute.xlu0 %1795
  %1797 = vrot.lane.b32.xlu0 %v1778, 64
  %v1798 = vpop.permute.xlu0 %1797
  %1799 = vrot.lane.b32.xlu0 %v1779, 64
  %v1800 = vpop.permute.xlu0 %1799
  %1801 = vrot.lane.b32.xlu0 %v1780, 64
  %v1802 = vpop.permute.xlu0 %1801
  %1803 = vrot.lane.b32.xlu0 %v1781, 64
  %v1804 = vpop.permute.xlu0 %1803
  %1805 = vrot.lane.b32.xlu0 %v1782, 64
  %v1806 = vpop.permute.xlu0 %1805
  %v1815 = vsel %vm184, %v1792, 0.0
  %1816 = vadd.xlane.f32.xlu0 %v1815
  %v1817 = vpop.xlane.xlu0 %1816
  %v1818 = vsel %vm184, %v1794, 0.0
  %1819 = vadd.xlane.f32.xlu0 %v1818
  %v1820 = vpop.xlane.xlu0 %1819
  %v1821 = vsel %vm184, %v1796, 0.0
  %1822 = vadd.xlane.f32.xlu0 %v1821
  %v1823 = vpop.xlane.xlu0 %1822
  %v1824 = vsel %vm184, %v1798, 0.0
  %1825 = vadd.xlane.f32.xlu0 %v1824
  %v1826 = vpop.xlane.xlu0 %1825
  %v1827 = vsel %vm184, %v1800, 0.0
  %1828 = vadd.xlane.f32.xlu0 %v1827
  %v1829 = vpop.xlane.xlu0 %1828
  %v1830 = vsel %vm184, %v1802, 0.0
  %1831 = vadd.xlane.f32.xlu0 %v1830
  %v1832 = vpop.xlane.xlu0 %1831
  %v1833 = vsel %vm184, %v1804, 0.0
  %1834 = vadd.xlane.f32.xlu0 %v1833
  %v1835 = vpop.xlane.xlu0 %1834
  %v1836 = vsel %vm184, %v1806, 0.0
  %1837 = vadd.xlane.f32.xlu0 %v1836
  %v1838 = vpop.xlane.xlu0 %1837
  %v1847 = vlaneseq
  %v1848 = vand.u32 %v1847, 127
  %v1849 = vlaneseq
  %v1850 = vshrl.u32 %v1849, 7
  %v1851 = vsub.s32 %v1848, %v1850
  %v1852 = vrot.slane %v1817, %v1851
  %v1853 = vlaneseq
  %v1854 = vshrl.u32 %v1853, 7
  %v1855 = vsub.s32 %v1848, %v1854
  %v1856 = vrot.slane %v1820, %v1855
  %v1857 = vlaneseq
  %v1858 = vshrl.u32 %v1857, 7
  %v1859 = vsub.s32 %v1848, %v1858
  %v1860 = vrot.slane %v1823, %v1859
  %v1861 = vlaneseq
  %v1862 = vshrl.u32 %v1861, 7
  %v1863 = vsub.s32 %v1848, %v1862
  %v1864 = vrot.slane %v1826, %v1863
  %v1865 = vlaneseq
  %v1866 = vshrl.u32 %v1865, 7
  %v1867 = vsub.s32 %v1848, %v1866
  %v1868 = vrot.slane %v1829, %v1867
  %v1869 = vlaneseq
  %v1870 = vshrl.u32 %v1869, 7
  %v1871 = vsub.s32 %v1848, %v1870
  %v1872 = vrot.slane %v1832, %v1871
  %v1873 = vlaneseq
  %v1874 = vshrl.u32 %v1873, 7
  %v1875 = vsub.s32 %v1848, %v1874
  %v1876 = vrot.slane %v1835, %v1875
  %v1877 = vlaneseq
  %v1878 = vshrl.u32 %v1877, 7
  %v1879 = vsub.s32 %v1848, %v1878
  %v1880 = vrot.slane %v1838, %v1879
  %vm1881 = vcmask 1041409
  %v1882 = vsel %vm1881, %v1856, %v1852
  %vm1883 = vcmask 1042434
  %v1884 = vsel %vm1883, %v1860, %v1882
  %vm1885 = vcmask 1043459
  %v1886 = vsel %vm1885, %v1864, %v1884
  %vm1887 = vcmask 1044484
  %v1888 = vsel %vm1887, %v1868, %v1886
  %vm1889 = vcmask 1045509
  %v1890 = vsel %vm1889, %v1872, %v1888
  %vm1891 = vcmask 1046534
  %v1892 = vsel %vm1891, %v1876, %v1890
  %vm1893 = vcmask 1047559
  %v1894 = vsel %vm1893, %v1880, %v1892
  %vm1896 = vcmask 64512
  %v1897 = vsel %vm1896, %v1894, -inf
  %1898 = vmax.xlane.f32.xlu0 %v1897
  %v1899 = vpop.xlane.xlu0 %1898
  %v1901 = vlaneseq
  %v1902 = vshrl.u32 %v1901, 7
  %v1903 = vsub.s32 0, %v1902
  %v1904 = vrot.slane %v1899, %v1903
  %v1905 = vlaneseq
  %v1906 = vshrl.u32 %v1905, 7
  %v1907 = vsub.s32 1, %v1906
  %v1908 = vrot.slane %v1899, %v1907
  %v1909 = vlaneseq
  %v1910 = vshrl.u32 %v1909, 7
  %v1911 = vsub.s32 2, %v1910
  %v1912 = vrot.slane %v1899, %v1911
  %v1913 = vlaneseq
  %v1914 = vshrl.u32 %v1913, 7
  %v1915 = vsub.s32 3, %v1914
  %v1916 = vrot.slane %v1899, %v1915
  %v1917 = vlaneseq
  %v1918 = vshrl.u32 %v1917, 7
  %v1919 = vsub.s32 4, %v1918
  %v1920 = vrot.slane %v1899, %v1919
  %v1921 = vlaneseq
  %v1922 = vshrl.u32 %v1921, 7
  %v1923 = vsub.s32 5, %v1922
  %v1924 = vrot.slane %v1899, %v1923
  %v1925 = vlaneseq
  %v1926 = vshrl.u32 %v1925, 7
  %v1927 = vsub.s32 6, %v1926
  %v1928 = vrot.slane %v1899, %v1927
  %v1929 = vlaneseq
  %v1930 = vshrl.u32 %v1929, 7
  %v1931 = vsub.s32 7, %v1930
  %v1932 = vrot.slane %v1899, %v1931
  %v1941 = vsub.f32 %v1817, %v1904
  %v1942 = vsub.f32 %v1820, %v1908
  %v1943 = vsub.f32 %v1823, %v1912
  %v1944 = vsub.f32 %v1826, %v1916
  %v1945 = vsub.f32 %v1829, %v1920
  %v1946 = vsub.f32 %v1832, %v1924
  %v1947 = vsub.f32 %v1835, %v1928
  %v1948 = vsub.f32 %v1838, %v1932
  %v1949 = vmul.f32 %v1941, 1.442695
  %v1950 = vpow.pop %v1949
  %v1951 = vmul.f32 %v1942, 1.442695
  %v1952 = vpow.pop %v1951
  %v1953 = vmul.f32 %v1943, 1.442695
  %v1954 = vpow.pop %v1953
  %v1955 = vmul.f32 %v1944, 1.442695
  %v1956 = vpow.pop %v1955
  %v1957 = vmul.f32 %v1945, 1.442695
  %v1958 = vpow.pop %v1957
  %v1959 = vmul.f32 %v1946, 1.442695
  %v1960 = vpow.pop %v1959
  %v1961 = vmul.f32 %v1947, 1.442695
  %v1962 = vpow.pop %v1961
  %v1963 = vmul.f32 %v1948, 1.442695
  %v1964 = vpow.pop %v1963
  %1973 = vset.pattern.permute.xlu0 0
  %1974 = vperm.xlu0 %1973, %v1950
  %v1975 = vpop.permute.xlu0 %1974
  %1976 = vset.pattern.permute.xlu0 0
  %1977 = vperm.xlu0 %1976, %v1952
  %v1978 = vpop.permute.xlu0 %1977
  %1979 = vset.pattern.permute.xlu0 0
  %1980 = vperm.xlu0 %1979, %v1954
  %v1981 = vpop.permute.xlu0 %1980
  %1982 = vset.pattern.permute.xlu0 0
  %1983 = vperm.xlu0 %1982, %v1956
  %v1984 = vpop.permute.xlu0 %1983
  %1985 = vset.pattern.permute.xlu0 0
  %1986 = vperm.xlu0 %1985, %v1958
  %v1987 = vpop.permute.xlu0 %1986
  %1988 = vset.pattern.permute.xlu0 0
  %1989 = vperm.xlu0 %1988, %v1960
  %v1990 = vpop.permute.xlu0 %1989
  %1991 = vset.pattern.permute.xlu0 0
  %1992 = vperm.xlu0 %1991, %v1962
  %v1993 = vpop.permute.xlu0 %1992
  %1994 = vset.pattern.permute.xlu0 0
  %1995 = vperm.xlu0 %1994, %v1964
  %v1996 = vpop.permute.xlu0 %1995
  %v1997 = vlaneseq
  %v1998 = vshrl.u32 %v1997, 7
  %v1999 = vsub.s32 %v1848, %v1998
  %v2000 = vrot.slane %v1975, %v1999
  %v2001 = vlaneseq
  %v2002 = vshrl.u32 %v2001, 7
  %v2003 = vsub.s32 %v1848, %v2002
  %v2004 = vrot.slane %v1978, %v2003
  %v2005 = vlaneseq
  %v2006 = vshrl.u32 %v2005, 7
  %v2007 = vsub.s32 %v1848, %v2006
  %v2008 = vrot.slane %v1981, %v2007
  %v2009 = vlaneseq
  %v2010 = vshrl.u32 %v2009, 7
  %v2011 = vsub.s32 %v1848, %v2010
  %v2012 = vrot.slane %v1984, %v2011
  %v2013 = vlaneseq
  %v2014 = vshrl.u32 %v2013, 7
  %v2015 = vsub.s32 %v1848, %v2014
  %v2016 = vrot.slane %v1987, %v2015
  %v2017 = vlaneseq
  %v2018 = vshrl.u32 %v2017, 7
  %v2019 = vsub.s32 %v1848, %v2018
  %v2020 = vrot.slane %v1990, %v2019
  %v2021 = vlaneseq
  %v2022 = vshrl.u32 %v2021, 7
  %v2023 = vsub.s32 %v1848, %v2022
  %v2024 = vrot.slane %v1993, %v2023
  %v2025 = vlaneseq
  %v2026 = vshrl.u32 %v2025, 7
  %v2027 = vsub.s32 %v1848, %v2026
  %v2028 = vrot.slane %v1996, %v2027
  %v2029 = vsel %vm1881, %v2004, %v2000
  %v2030 = vsel %vm1883, %v2008, %v2029
  %v2031 = vsel %vm1885, %v2012, %v2030
  %v2032 = vsel %vm1887, %v2016, %v2031
  %v2033 = vsel %vm1889, %v2020, %v2032
  %v2034 = vsel %vm1891, %v2024, %v2033
  %v2035 = vsel %vm1893, %v2028, %v2034
  %v2037 = vsel %vm1896, %v2035, 0.0
  %2038 = vadd.xlane.f32.xlu0 %v2037
  %v2039 = vpop.xlane.xlu0 %2038
  %v2041 = vlaneseq
  %v2042 = vshrl.u32 %v2041, 7
  %v2043 = vsub.s32 0, %v2042
  %v2044 = vrot.slane %v2039, %v2043
  %v2045 = vlaneseq
  %v2046 = vshrl.u32 %v2045, 7
  %v2047 = vsub.s32 1, %v2046
  %v2048 = vrot.slane %v2039, %v2047
  %v2049 = vlaneseq
  %v2050 = vshrl.u32 %v2049, 7
  %v2051 = vsub.s32 2, %v2050
  %v2052 = vrot.slane %v2039, %v2051
  %v2053 = vlaneseq
  %v2054 = vshrl.u32 %v2053, 7
  %v2055 = vsub.s32 3, %v2054
  %v2056 = vrot.slane %v2039, %v2055
  %v2057 = vlaneseq
  %v2058 = vshrl.u32 %v2057, 7
  %v2059 = vsub.s32 4, %v2058
  %v2060 = vrot.slane %v2039, %v2059
  %v2061 = vlaneseq
  %v2062 = vshrl.u32 %v2061, 7
  %v2063 = vsub.s32 5, %v2062
  %v2064 = vrot.slane %v2039, %v2063
  %v2065 = vlaneseq
  %v2066 = vshrl.u32 %v2065, 7
  %v2067 = vsub.s32 6, %v2066
  %v2068 = vrot.slane %v2039, %v2067
  %v2069 = vlaneseq
  %v2070 = vshrl.u32 %v2069, 7
  %v2071 = vsub.s32 7, %v2070
  %v2072 = vrot.slane %v2039, %v2071
  %v2081 = vrcp.pop %v2044
  %v2082 = vmul.f32 %v1950, %v2081
  %v2083 = vrcp.pop %v2048
  %v2084 = vmul.f32 %v1952, %v2083
  %v2085 = vrcp.pop %v2052
  %v2086 = vmul.f32 %v1954, %v2085
  %v2087 = vrcp.pop %v2056
  %v2088 = vmul.f32 %v1956, %v2087
  %v2089 = vrcp.pop %v2060
  %v2090 = vmul.f32 %v1958, %v2089
  %v2091 = vrcp.pop %v2064
  %v2092 = vmul.f32 %v1960, %v2091
  %v2093 = vrcp.pop %v2068
  %v2094 = vmul.f32 %v1962, %v2093
  %v2095 = vrcp.pop %v2072
  %v2096 = vmul.f32 %v1964, %v2095
  %2098 = vset.pattern.permute.xlu0 0
  %2099 = vperm.xlu0 %2098, %v2082
  %v2100 = vpop.permute.xlu0 %2099
  %2103 = vset.pattern.permute.xlu0 0
  %2104 = vperm.xlu0 %2103, %v2084
  %v2105 = vpop.permute.xlu0 %2104
  %2108 = vset.pattern.permute.xlu0 0
  %2109 = vperm.xlu0 %2108, %v2086
  %v2110 = vpop.permute.xlu0 %2109
  %2113 = vset.pattern.permute.xlu0 0
  %2114 = vperm.xlu0 %2113, %v2088
  %v2115 = vpop.permute.xlu0 %2114
  %2118 = vset.pattern.permute.xlu0 0
  %2119 = vperm.xlu0 %2118, %v2090
  %v2120 = vpop.permute.xlu0 %2119
  %2123 = vset.pattern.permute.xlu0 0
  %2124 = vperm.xlu0 %2123, %v2092
  %v2125 = vpop.permute.xlu0 %2124
  %2128 = vset.pattern.permute.xlu0 0
  %2129 = vperm.xlu0 %2128, %v2094
  %v2130 = vpop.permute.xlu0 %2129
  %2133 = vset.pattern.permute.xlu0 0
  %2134 = vperm.xlu0 %2133, %v2096
  %v2135 = vpop.permute.xlu0 %2134
  %v2137 = vmul.f32 %v2100, %v1767
  %v2138 = vmul.f32 %v2105, %v1768
  %v2139 = vmul.f32 %v2110, %v1769
  %v2140 = vmul.f32 %v2115, %v1770
  %v2141 = vmul.f32 %v2120, %v1771
  %v2142 = vmul.f32 %v2125, %v1772
  %v2143 = vmul.f32 %v2130, %v1773
  %v2144 = vmul.f32 %v2135, %v1774
  %vm2145 = vcmask 785920
  %v2146 = vsel %vm2145, %v2137, 0.0
  %v2147 = vrot.slane %v2146, 4
  %v2148 = vadd.f32 %v2146, %v2147
  %v2149 = vrot.slane %v2148, 2
  %v2150 = vadd.f32 %v2148, %v2149
  %v2151 = vrot.slane %v2150, 1
  %v2152 = vadd.f32 %v2150, %v2151
  %v2153 = vsel %vm2145, %v2138, 0.0
  %v2154 = vrot.slane %v2153, 4
  %v2155 = vadd.f32 %v2153, %v2154
  %v2156 = vrot.slane %v2155, 2
  %v2157 = vadd.f32 %v2155, %v2156
  %v2158 = vrot.slane %v2157, 1
  %v2159 = vadd.f32 %v2157, %v2158
  %v2160 = vsel %vm2145, %v2139, 0.0
  %v2161 = vrot.slane %v2160, 4
  %v2162 = vadd.f32 %v2160, %v2161
  %v2163 = vrot.slane %v2162, 2
  %v2164 = vadd.f32 %v2162, %v2163
  %v2165 = vrot.slane %v2164, 1
  %v2166 = vadd.f32 %v2164, %v2165
  %v2167 = vsel %vm2145, %v2140, 0.0
  %v2168 = vrot.slane %v2167, 4
  %v2169 = vadd.f32 %v2167, %v2168
  %v2170 = vrot.slane %v2169, 2
  %v2171 = vadd.f32 %v2169, %v2170
  %v2172 = vrot.slane %v2171, 1
  %v2173 = vadd.f32 %v2171, %v2172
  %v2174 = vsel %vm2145, %v2141, 0.0
  %v2175 = vrot.slane %v2174, 4
  %v2176 = vadd.f32 %v2174, %v2175
  %v2177 = vrot.slane %v2176, 2
  %v2178 = vadd.f32 %v2176, %v2177
  %v2179 = vrot.slane %v2178, 1
  %v2180 = vadd.f32 %v2178, %v2179
  %v2181 = vsel %vm2145, %v2142, 0.0
  %v2182 = vrot.slane %v2181, 4
  %v2183 = vadd.f32 %v2181, %v2182
  %v2184 = vrot.slane %v2183, 2
  %v2185 = vadd.f32 %v2183, %v2184
  %v2186 = vrot.slane %v2185, 1
  %v2187 = vadd.f32 %v2185, %v2186
  %v2188 = vsel %vm2145, %v2143, 0.0
  %v2189 = vrot.slane %v2188, 4
  %v2190 = vadd.f32 %v2188, %v2189
  %v2191 = vrot.slane %v2190, 2
  %v2192 = vadd.f32 %v2190, %v2191
  %v2193 = vrot.slane %v2192, 1
  %v2194 = vadd.f32 %v2192, %v2193
  %v2195 = vsel %vm2145, %v2144, 0.0
  %v2196 = vrot.slane %v2195, 4
  %v2197 = vadd.f32 %v2195, %v2196
  %v2198 = vrot.slane %v2197, 2
  %v2199 = vadd.f32 %v2197, %v2198
  %v2200 = vrot.slane %v2199, 1
  %v2201 = vadd.f32 %v2199, %v2200
  %2202 = vrot.lane.b32.xlu0 %v1030, 64
  %v2203 = vpop.permute.xlu0 %2202
  %v2204 = vsel %vm184, %v2203, 0
  %2206 = vmatprep.subr.mxu0 0.0
  %2207 = vmatpush1.msra.mxu0 %v27
  %2208 = vmatprep.subr.mxu0 0.0
  %2209 = vmatpush1.msra.mxu0 %v28
  %2210 = vmatprep.subr.mxu0 0.0
  %2211 = vmatpush1.msra.mxu0 %v29
  %2212 = vmatprep.subr.mxu0 0.0
  %2213 = vmatpush1.msra.mxu0 %v30
  %2214 = vmatprep.subr.mxu0 0.0
  %2215 = vmatpush1.msra.mxu0 0.0
  %2216 = vmatprep.subr.mxu0 0.0
  %2217 = vmatpush1.msra.mxu0 0.0
  %2218 = vmatprep.subr.mxu0 0.0
  %2219 = vmatpush1.msra.mxu0 0.0
  %2220 = vmatprep.subr.mxu0 0.0
  %2221 = vmatpush1.msra.mxu0 0.0
  %2222 = vmatprep.subr.mxu0 0.0
  %2223 = vmatpush1.msra.mxu0 0.0
  %2224 = vmatprep.subr.mxu0 0.0
  %2225 = vmatpush1.msra.mxu0 0.0
  %2226 = vmatprep.subr.mxu0 0.0
  %2227 = vmatpush1.msra.mxu0 0.0
  %2228 = vmatprep.subr.mxu0 0.0
  %2229 = vmatpush1.msra.mxu0 0.0
  %2230 = vmatprep.subr.mxu0 0.0
  %2231 = vmatpush1.msra.mxu0 0.0
  %2232 = vmatprep.subr.mxu0 0.0
  %2233 = vmatpush1.msra.mxu0 0.0
  %2234 = vmatprep.subr.mxu0 0.0
  %2235 = vmatpush1.msra.mxu0 0.0
  %2236 = vmatprep.subr.mxu0 0.0
  %2237 = vmatpush1.msra.mxu0 0.0
  %2238 = vmatprep.subr.mxu0 0.0
  %2239 = vmatpush1.msra.mxu0 0.0
  %2240 = vmatprep.subr.mxu0 0.0
  %2241 = vmatpush1.msra.mxu0 0.0
  %2242 = vmatprep.subr.mxu0 0.0
  %2243 = vmatpush1.msra.mxu0 0.0
  %2244 = vmatprep.subr.mxu0 0.0
  %2245 = vmatpush1.msra.mxu0 0.0
  %2246 = vmatprep.subr.mxu0 0.0
  %2247 = vmatpush1.msra.mxu0 0.0
  %2248 = vmatprep.subr.mxu0 0.0
  %2249 = vmatpush1.msra.mxu0 0.0
  %2250 = vmatprep.subr.mxu0 0.0
  %2251 = vmatpush1.msra.mxu0 0.0
  %2252 = vmatprep.subr.mxu0 0.0
  %2253 = vmatpush1.msra.mxu0 0.0
  %2254 = vmatprep.subr.mxu0 0.0
  %2255 = vmatpush1.msra.mxu0 0.0
  %2256 = vmatprep.subr.mxu0 0.0
  %2257 = vmatpush1.msra.mxu0 0.0
  %2258 = vmatprep.subr.mxu0 0.0
  %2259 = vmatpush1.msra.mxu0 0.0
  %2260 = vmatprep.subr.mxu0 0.0
  %2261 = vmatpush1.msra.mxu0 0.0
  %2262 = vmatprep.subr.mxu0 0.0
  %2263 = vmatpush1.msra.mxu0 0.0
  %2264 = vmatprep.subr.mxu0 0.0
  %2265 = vmatpush1.msra.mxu0 0.0
  %2266 = vmatprep.subr.mxu0 0.0
  %2267 = vmatpush1.msra.mxu0 0.0
  %2268 = vmatprep.subr.mxu0 0.0
  %2269 = vmatpush1.msra.mxu0 0.0
  %2270 = vmatprep.mubr.f32.mxu0 0.0
  %2271 = vmatmul.mubr.f32.gmra.mrb[0].mxu0 %v2204
  %v2272 = vpop.f32.mrb[0].mxu0
  %v2273 = vadd.f32 0.0, %v2272
  %v2274 = vpop.f32.mrb[0].mxu0
  %2275 = vdwg.mxu0
  %v2284 = vsel %vm1881, %v2159, %v2152
  %v2285 = vsel %vm1883, %v2166, %v2284
  %v2286 = vsel %vm1885, %v2173, %v2285
  %v2287 = vsel %vm1887, %v2180, %v2286
  %v2288 = vsel %vm1889, %v2187, %v2287
  %v2289 = vsel %vm1891, %v2194, %v2288
  %v2290 = vsel %vm1893, %v2201, %v2289
  %2291 = vrot.lane.b32.xlu0 %v2290, 64
  %v2292 = vpop.permute.xlu0 %2291
  %v2293 = vsel %vm184, %v2292, 0
  %2295 = vmatprep.subr.mxu0 0.0
  %2296 = vmatpush1.msra.mxu0 %v23
  %2297 = vmatprep.subr.mxu0 0.0
  %2298 = vmatpush1.msra.mxu0 %v24
  %2299 = vmatprep.subr.mxu0 0.0
  %2300 = vmatpush1.msra.mxu0 %v25
  %2301 = vmatprep.subr.mxu0 0.0
  %2302 = vmatpush1.msra.mxu0 %v26
  %2303 = vmatprep.subr.mxu0 0.0
  %2304 = vmatpush1.msra.mxu0 0.0
  %2305 = vmatprep.subr.mxu0 0.0
  %2306 = vmatpush1.msra.mxu0 0.0
  %2307 = vmatprep.subr.mxu0 0.0
  %2308 = vmatpush1.msra.mxu0 0.0
  %2309 = vmatprep.subr.mxu0 0.0
  %2310 = vmatpush1.msra.mxu0 0.0
  %2311 = vmatprep.subr.mxu0 0.0
  %2312 = vmatpush1.msra.mxu0 0.0
  %2313 = vmatprep.subr.mxu0 0.0
  %2314 = vmatpush1.msra.mxu0 0.0
  %2315 = vmatprep.subr.mxu0 0.0
  %2316 = vmatpush1.msra.mxu0 0.0
  %2317 = vmatprep.subr.mxu0 0.0
  %2318 = vmatpush1.msra.mxu0 0.0
  %2319 = vmatprep.subr.mxu0 0.0
  %2320 = vmatpush1.msra.mxu0 0.0
  %2321 = vmatprep.subr.mxu0 0.0
  %2322 = vmatpush1.msra.mxu0 0.0
  %2323 = vmatprep.subr.mxu0 0.0
  %2324 = vmatpush1.msra.mxu0 0.0
  %2325 = vmatprep.subr.mxu0 0.0
  %2326 = vmatpush1.msra.mxu0 0.0
  %2327 = vmatprep.subr.mxu0 0.0
  %2328 = vmatpush1.msra.mxu0 0.0
  %2329 = vmatprep.subr.mxu0 0.0
  %2330 = vmatpush1.msra.mxu0 0.0
  %2331 = vmatprep.subr.mxu0 0.0
  %2332 = vmatpush1.msra.mxu0 0.0
  %2333 = vmatprep.subr.mxu0 0.0
  %2334 = vmatpush1.msra.mxu0 0.0
  %2335 = vmatprep.subr.mxu0 0.0
  %2336 = vmatpush1.msra.mxu0 0.0
  %2337 = vmatprep.subr.mxu0 0.0
  %2338 = vmatpush1.msra.mxu0 0.0
  %2339 = vmatprep.subr.mxu0 0.0
  %2340 = vmatpush1.msra.mxu0 0.0
  %2341 = vmatprep.subr.mxu0 0.0
  %2342 = vmatpush1.msra.mxu0 0.0
  %2343 = vmatprep.subr.mxu0 0.0
  %2344 = vmatpush1.msra.mxu0 0.0
  %2345 = vmatprep.subr.mxu0 0.0
  %2346 = vmatpush1.msra.mxu0 0.0
  %2347 = vmatprep.subr.mxu0 0.0
  %2348 = vmatpush1.msra.mxu0 0.0
  %2349 = vmatprep.subr.mxu0 0.0
  %2350 = vmatpush1.msra.mxu0 0.0
  %2351 = vmatprep.subr.mxu0 0.0
  %2352 = vmatpush1.msra.mxu0 0.0
  %2353 = vmatprep.subr.mxu0 0.0
  %2354 = vmatpush1.msra.mxu0 0.0
  %2355 = vmatprep.subr.mxu0 0.0
  %2356 = vmatpush1.msra.mxu0 0.0
  %2357 = vmatprep.subr.mxu0 0.0
  %2358 = vmatpush1.msra.mxu0 0.0
  %2359 = vmatprep.mubr.f32.mxu0 0.0
  %2360 = vmatmul.mubr.f32.gmra.mrb[0].mxu0 %v2293
  %v2361 = vpop.f32.mrb[0].mxu0
  %v2362 = vadd.f32 %v2273, %v2361
  %v2363 = vpop.f32.mrb[0].mxu0
  %2364 = vdwg.mxu0
  %v2365 = vlaneseq
  %v2366 = vshrl.u32 %v2365, 7
  %v2367 = vsub.s32 0, %v2366
  %v2368 = vrot.slane %v39, %v2367
  %v2369 = vadd.f32 %v2362, %v2368
  %v2370 = vtanh.pop %v2369
  %v2371 = vlaneseq
  %v2372 = vshrl.u32 %v2371, 7
  %v2373 = vsub.s32 0, %v2372
  %v2374 = vrot.slane %v40, %v2373
  %v2376 = vsel %vm184, %v2370, 0
  %2378 = vmatprep.subr.mxu0 0.0
  %2379 = vmatpush1.msra.mxu0 %v31
  %2380 = vmatprep.subr.mxu0 0.0
  %2381 = vmatpush1.msra.mxu0 %v32
  %2382 = vmatprep.subr.mxu0 0.0
  %2383 = vmatpush1.msra.mxu0 %v33
  %2384 = vmatprep.subr.mxu0 0.0
  %2385 = vmatpush1.msra.mxu0 %v34
  %2386 = vmatprep.subr.mxu0 0.0
  %2387 = vmatpush1.msra.mxu0 0.0
  %2388 = vmatprep.subr.mxu0 0.0
  %2389 = vmatpush1.msra.mxu0 0.0
  %2390 = vmatprep.subr.mxu0 0.0
  %2391 = vmatpush1.msra.mxu0 0.0
  %2392 = vmatprep.subr.mxu0 0.0
  %2393 = vmatpush1.msra.mxu0 0.0
  %2394 = vmatprep.subr.mxu0 0.0
  %2395 = vmatpush1.msra.mxu0 0.0
  %2396 = vmatprep.subr.mxu0 0.0
  %2397 = vmatpush1.msra.mxu0 0.0
  %2398 = vmatprep.subr.mxu0 0.0
  %2399 = vmatpush1.msra.mxu0 0.0
  %2400 = vmatprep.subr.mxu0 0.0
  %2401 = vmatpush1.msra.mxu0 0.0
  %2402 = vmatprep.subr.mxu0 0.0
  %2403 = vmatpush1.msra.mxu0 0.0
  %2404 = vmatprep.subr.mxu0 0.0
  %2405 = vmatpush1.msra.mxu0 0.0
  %2406 = vmatprep.subr.mxu0 0.0
  %2407 = vmatpush1.msra.mxu0 0.0
  %2408 = vmatprep.subr.mxu0 0.0
  %2409 = vmatpush1.msra.mxu0 0.0
  %2410 = vmatprep.subr.mxu0 0.0
  %2411 = vmatpush1.msra.mxu0 0.0
  %2412 = vmatprep.subr.mxu0 0.0
  %2413 = vmatpush1.msra.mxu0 0.0
  %2414 = vmatprep.subr.mxu0 0.0
  %2415 = vmatpush1.msra.mxu0 0.0
  %2416 = vmatprep.subr.mxu0 0.0
  %2417 = vmatpush1.msra.mxu0 0.0
  %2418 = vmatprep.subr.mxu0 0.0
  %2419 = vmatpush1.msra.mxu0 0.0
  %2420 = vmatprep.subr.mxu0 0.0
  %2421 = vmatpush1.msra.mxu0 0.0
  %2422 = vmatprep.subr.mxu0 0.0
  %2423 = vmatpush1.msra.mxu0 0.0
  %2424 = vmatprep.subr.mxu0 0.0
  %2425 = vmatpush1.msra.mxu0 0.0
  %2426 = vmatprep.subr.mxu0 0.0
  %2427 = vmatpush1.msra.mxu0 0.0
  %2428 = vmatprep.subr.mxu0 0.0
  %2429 = vmatpush1.msra.mxu0 0.0
  %2430 = vmatprep.subr.mxu0 0.0
  %2431 = vmatpush1.msra.mxu0 0.0
  %2432 = vmatprep.subr.mxu0 0.0
  %2433 = vmatpush1.msra.mxu0 0.0
  %2434 = vmatprep.subr.mxu0 0.0
  %2435 = vmatpush1.msra.mxu0 0.0
  %2436 = vmatprep.subr.mxu0 0.0
  %2437 = vmatpush1.msra.mxu0 0.0
  %2438 = vmatprep.subr.mxu0 0.0
  %2439 = vmatpush1.msra.mxu0 0.0
  %2440 = vmatprep.subr.mxu0 0.0
  %2441 = vmatpush1.msra.mxu0 0.0
  %2442 = vmatprep.mubr.f32.mxu0 0.0
  %2443 = vmatmul.mubr.f32.gmra.mrb[0].mxu0 %v2376
  %v2444 = vpop.f32.mrb[0].mxu0
  %v2445 = vadd.f32 %v2374, %v2444
  %v2446 = vpop.f32.mrb[0].mxu0
  %2447 = vdwg.mxu0
  %v2448 = vmax.f32 %v2445, 0.0
  %v2449 = vlaneseq
  %v2450 = vshrl.u32 %v2449, 7
  %v2451 = vsub.s32 0, %v2450
  %v2452 = vrot.slane %v41, %v2451
  %v2454 = vsel %vm54, %v2448, 0
  %2456 = vmatprep.subr.mxu0 0.0
  %2457 = vmatpush1.msra.mxu0 %v35
  %2458 = vmatprep.subr.mxu0 0.0
  %2459 = vmatpush1.msra.mxu0 %v36
  %2460 = vmatprep.subr.mxu0 0.0
  %2461 = vmatpush1.msra.mxu0 0.0
  %2462 = vmatprep.subr.mxu0 0.0
  %2463 = vmatpush1.msra.mxu0 0.0
  %2464 = vmatprep.subr.mxu0 0.0
  %2465 = vmatpush1.msra.mxu0 0.0
  %2466 = vmatprep.subr.mxu0 0.0
  %2467 = vmatpush1.msra.mxu0 0.0
  %2468 = vmatprep.subr.mxu0 0.0
  %2469 = vmatpush1.msra.mxu0 0.0
  %2470 = vmatprep.subr.mxu0 0.0
  %2471 = vmatpush1.msra.mxu0 0.0
  %2472 = vmatprep.subr.mxu0 0.0
  %2473 = vmatpush1.msra.mxu0 0.0
  %2474 = vmatprep.subr.mxu0 0.0
  %2475 = vmatpush1.msra.mxu0 0.0
  %2476 = vmatprep.subr.mxu0 0.0
  %2477 = vmatpush1.msra.mxu0 0.0
  %2478 = vmatprep.subr.mxu0 0.0
  %2479 = vmatpush1.msra.mxu0 0.0
  %2480 = vmatprep.subr.mxu0 0.0
  %2481 = vmatpush1.msra.mxu0 0.0
  %2482 = vmatprep.subr.mxu0 0.0
  %2483 = vmatpush1.msra.mxu0 0.0
  %2484 = vmatprep.subr.mxu0 0.0
  %2485 = vmatpush1.msra.mxu0 0.0
  %2486 = vmatprep.subr.mxu0 0.0
  %2487 = vmatpush1.msra.mxu0 0.0
  %2488 = vmatprep.subr.mxu0 0.0
  %2489 = vmatpush1.msra.mxu0 0.0
  %2490 = vmatprep.subr.mxu0 0.0
  %2491 = vmatpush1.msra.mxu0 0.0
  %2492 = vmatprep.subr.mxu0 0.0
  %2493 = vmatpush1.msra.mxu0 0.0
  %2494 = vmatprep.subr.mxu0 0.0
  %2495 = vmatpush1.msra.mxu0 0.0
  %2496 = vmatprep.subr.mxu0 0.0
  %2497 = vmatpush1.msra.mxu0 0.0
  %2498 = vmatprep.subr.mxu0 0.0
  %2499 = vmatpush1.msra.mxu0 0.0
  %2500 = vmatprep.subr.mxu0 0.0
  %2501 = vmatpush1.msra.mxu0 0.0
  %2502 = vmatprep.subr.mxu0 0.0
  %2503 = vmatpush1.msra.mxu0 0.0
  %2504 = vmatprep.subr.mxu0 0.0
  %2505 = vmatpush1.msra.mxu0 0.0
  %2506 = vmatprep.subr.mxu0 0.0
  %2507 = vmatpush1.msra.mxu0 0.0
  %2508 = vmatprep.subr.mxu0 0.0
  %2509 = vmatpush1.msra.mxu0 0.0
  %2510 = vmatprep.subr.mxu0 0.0
  %2511 = vmatpush1.msra.mxu0 0.0
  %2512 = vmatprep.subr.mxu0 0.0
  %2513 = vmatpush1.msra.mxu0 0.0
  %2514 = vmatprep.subr.mxu0 0.0
  %2515 = vmatpush1.msra.mxu0 0.0
  %2516 = vmatprep.subr.mxu0 0.0
  %2517 = vmatpush1.msra.mxu0 0.0
  %2518 = vmatprep.subr.mxu0 0.0
  %2519 = vmatpush1.msra.mxu0 0.0
  %2520 = vmatprep.mubr.f32.mxu0 0.0
  %2521 = vmatmul.mubr.f32.gmra.mrb[0].mxu0 %v2454
  %v2522 = vpop.f32.mrb[0].mxu0
  %v2523 = vadd.f32 %v2452, %v2522
  %v2524 = vpop.f32.mrb[0].mxu0
  %2525 = vdwg.mxu0
  %v2526 = vmax.f32 %v2523, 0.0
  %2527 = vrot.lane.b32.xlu0 %v2370, 3
  %v2528 = vpop.permute.xlu0 %2527
  %v2530 = vadd.s32 %v1848, 4294967261
  %v2531 = vlaneseq
  %v2532 = vshrl.u32 %v2531, 7
  %v2533 = vsub.s32 %v2530, %v2532
  %v2534 = vrot.slane %v2100, %v2533
  %v2535 = vlaneseq
  %v2536 = vshrl.u32 %v2535, 7
  %v2537 = vsub.s32 %v2530, %v2536
  %v2538 = vrot.slane %v2105, %v2537
  %v2539 = vlaneseq
  %v2540 = vshrl.u32 %v2539, 7
  %v2541 = vsub.s32 %v2530, %v2540
  %v2542 = vrot.slane %v2110, %v2541
  %v2543 = vlaneseq
  %v2544 = vshrl.u32 %v2543, 7
  %v2545 = vsub.s32 %v2530, %v2544
  %v2546 = vrot.slane %v2115, %v2545
  %v2547 = vlaneseq
  %v2548 = vshrl.u32 %v2547, 7
  %v2549 = vsub.s32 %v2530, %v2548
  %v2550 = vrot.slane %v2120, %v2549
  %v2551 = vlaneseq
  %v2552 = vshrl.u32 %v2551, 7
  %v2553 = vsub.s32 %v2530, %v2552
  %v2554 = vrot.slane %v2125, %v2553
  %v2555 = vlaneseq
  %v2556 = vshrl.u32 %v2555, 7
  %v2557 = vsub.s32 %v2530, %v2556
  %v2558 = vrot.slane %v2130, %v2557
  %v2559 = vlaneseq
  %v2560 = vshrl.u32 %v2559, 7
  %v2561 = vsub.s32 %v2530, %v2560
  %v2562 = vrot.slane %v2135, %v2561
  %v2563 = vsel %vm1881, %v2538, %v2534
  %v2564 = vsel %vm1883, %v2542, %v2563
  %v2565 = vsel %vm1885, %v2546, %v2564
  %v2566 = vsel %vm1887, %v2550, %v2565
  %v2567 = vsel %vm1889, %v2554, %v2566
  %v2568 = vsel %vm1891, %v2558, %v2567
  %v2569 = vsel %vm1893, %v2562, %v2568
  %vm2571 = vcmask 23552
  %v2572 = vsel %vm2571, %v2526, %v2528
  %vm2573 = vcmask 285696
  %v2574 = vsel %vm2573, %v2572, %v2569
  %vm2575 = vcmask 351232
  %v2576 = vsel %vm2575, %v2574, 0.0
  %2577 = vst [vmem:[%s4] sm:$0xff] %v2576
  // Predicated region
  $region18: #{rnn_classifier_forward.1} parent=0 // pred_check
    _
  $region19: #{rnn_classifier_forward.1} parent=0 // pred_check_branch
    %2579 = sbr.rel (0) target = $region21
  $region20: #{rnn_classifier_forward.1} parent=0 // pred_region
    _
  $region21: #{rnn_classifier_forward.1} parent=0 // pred_fallthru
    _
  // Predicated region
  $region22: #{rnn_classifier_forward.1} parent=0 // pred_check
    _
  $region23: #{rnn_classifier_forward.1} parent=0 // pred_check_branch
    %2581 = sbr.rel (0) target = $region25
  $region24: #{rnn_classifier_forward.1} parent=0 // pred_region
    _
  $region25: #{rnn_classifier_forward.1} parent=0 // pred_fallthru
    _

</llo_original>
